<compile_context>
chip_gen: v7x
topology: tpu7x:2x2x1
jax: 0.10.0
libtpu: 0.0.40
codegen_flags: <defaults>
</compile_context>

<pallas_src>
import functools

import jax
import jax.numpy as jnp
from jax import lax
from jax.experimental import pallas as pl
from jax.experimental.pallas import tpu as pltpu


def opsin_kernel(u_ref, p_ref, y_ref, *, No):
    # u_ref: SMEM (T,)               f32  light input
    # p_ref: SMEM (No*No+2*No+1,)    f32  packed [A row-major | B | C | beta]
    # y_ref: SMEM (T,)               f32  output photocurrent
    T = y_ref.shape[0]

    a_off = 0
    b_off = No * No
    c_off = No * No + No
    beta_off = No * No + 2 * No

    # ---- Hoist every parameter read and all derived constants into sregs ----
    beta = p_ref[beta_off]
    a = [[p_ref[a_off + i * No + j] for j in range(No)] for i in range(No)]
    bb = [beta * p_ref[b_off + i] for i in range(No)]            # beta * B
    c = [p_ref[c_off + i] for i in range(No)]
    # Lookahead-2 constants: A^2 and A @ (beta*B).
    a2 = [[sum(a[i][k] * a[k][j] for k in range(No)) for j in range(No)]
          for i in range(No)]
    abb = [sum(a[i][j] * bb[j] for j in range(No)) for i in range(No)]

    # ---- Peel first iteration: x_0 = 0  =>  x_1 = bb * u[0] ----
    u0 = u_ref[0]
    x = tuple(bb[i] * u0 for i in range(No))
    y_ref[0] = sum(c[i] * x[i] for i in range(No))

    # ---- Main loop: two timesteps per serial dependency link ----
    n_rem = T - 1                  # remaining steps t = 1 .. T-1
    n_pairs = n_rem // 2

    def pair_body(p, x):
        t1 = 1 + 2 * p
        t2 = t1 + 1
        u1 = u_ref[t1]
        u2 = u_ref[t2]
        # x_{t1}: off the critical chain, only needed for y[t1].
        x1 = tuple(
            sum(a[i][j] * x[j] for j in range(No)) + bb[i] * u1
            for i in range(No)
        )
        # x_{t2}: jump two steps directly from x (critical chain).
        x2 = tuple(
            sum(a2[i][j] * x[j] for j in range(No)) + abb[i] * u1 + bb[i] * u2
            for i in range(No)
        )
        y_ref[t1] = sum(c[i] * x1[i] for i in range(No))   # scalar SMEM store
        y_ref[t2] = sum(c[i] * x2[i] for i in range(No))
        return x2

    if n_pairs > 0:
        # Small trip count: fully unroll so the LLO scheduler overlaps
        # consecutive pairs on the 2 scalar-ALU slots.
        x = lax.fori_loop(0, n_pairs, pair_body, x, unroll=True)

    # ---- Remainder step if (T-1) is odd ----
    if n_rem % 2 == 1:
        t = T - 1
        u_t = u_ref[t]
        x = tuple(
            sum(a[i][j] * x[j] for j in range(No)) + bb[i] * u_t
            for i in range(No)
        )
        y_ref[t] = sum(c[i] * x[i] for i in range(No))


def opsin_forward(u, A_o, B_o, C_o, beta):
    """Pallas implementation of SingleClusterOpsinModel.forward."""
    u = u.astype(jnp.float32)
    T = u.shape[0]
    No = A_o.shape[0]

    # Pack all parameters into a single SMEM array: [A row-major | B | C | beta].
    # (beta stays packed, NOT pre-multiplied into B in the wrapper.)
    params = jnp.concatenate([
        A_o.reshape(-1).astype(jnp.float32),        # (No*No,)
        B_o.reshape(-1).astype(jnp.float32),        # (No,)
        C_o.reshape(-1).astype(jnp.float32),        # (No,)
        jnp.reshape(beta, (1,)).astype(jnp.float32),  # (1,)
    ])

    smem = pl.BlockSpec(memory_space=pltpu.MemorySpace.SMEM)
    cost = pl.CostEstimate(
        flops=T * (2 * No * No + 2 * No),
        transcendentals=0,
        bytes_accessed=4 * (2 * T + No * No + 2 * No + 1),
    )
    y = pl.pallas_call(
        functools.partial(opsin_kernel, No=No),
        out_shape=jax.ShapeDtypeStruct((T,), jnp.float32),
        in_specs=[smem, smem],                       # u, packed params
        out_specs=smem,                              # y (scalar stores)
        cost_estimate=cost,
    )(u, params)
    return y


def opsin_ref(u, A_o, B_o, C_o, beta):
    """Pure-JAX reference matching the PyTorch loop exactly."""
    def step(x, u_t):
        x = A_o @ x + B_o.reshape(-1) * (beta * u_t)
        y_t = (C_o @ x)[0]
        return x, y_t
    x0 = jnp.zeros((A_o.shape[0],), jnp.float32)
    _, y = lax.scan(step, x0, u.astype(jnp.float32))
    return y


if __name__ == "__main__":
    No = 2
    T = 50

    key = jax.random.PRNGKey(0)
    k_b, k_c, k_u = jax.random.split(key, 3)

    # Deterministic parameter init mirroring the module's __init__ shapes.
    A_o = jnp.eye(No, dtype=jnp.float32)                               # (No, No)
    B_o = 0.1 * jax.random.normal(k_b, (No, 1), dtype=jnp.float32)     # (No, 1)
    C_o = 0.1 * jax.random.normal(k_c, (1, No), dtype=jnp.float32)     # (1, No)
    beta = jnp.array(1.0, dtype=jnp.float32)                           # scalar

    # Light input u of shape [T].
    u = jax.random.normal(k_u, (T,), dtype=jnp.float32)

    y_kernel = jax.block_until_ready(opsin_forward(u, A_o, B_o, C_o, beta))
    y_expect = jax.block_until_ready(opsin_ref(u, A_o, B_o, C_o, beta))

    assert y_kernel.shape == (T,)
    assert jnp.allclose(y_kernel, y_expect, atol=1e-5, rtol=1e-5), (
        y_kernel, y_expect)

    print("KERNEL_OK")
</pallas_src>

<mosaic_0001>
module attributes {stable_mosaic.version = 11 : i64} {
  func.func @opsin_kernel(%arg0: memref<50xf32, #tpu.memory_space<smem>>, %arg1: memref<9xf32, #tpu.memory_space<smem>>, %arg2: memref<50xf32, #tpu.memory_space<smem>>) attributes {dimension_semantics = [], scalar_prefetch = 0 : i64, scratch_operands = 0 : i64, tpu.core_type = #tpu.core_type<tc>} {
    %c8 = arith.constant 8 : index
    %0 = memref.load %arg1[%c8] : memref<9xf32, #tpu.memory_space<smem>>
    %c0 = arith.constant 0 : index
    %1 = memref.load %arg1[%c0] : memref<9xf32, #tpu.memory_space<smem>>
    %c1 = arith.constant 1 : index
    %2 = memref.load %arg1[%c1] : memref<9xf32, #tpu.memory_space<smem>>
    %c2 = arith.constant 2 : index
    %3 = memref.load %arg1[%c2] : memref<9xf32, #tpu.memory_space<smem>>
    %c3 = arith.constant 3 : index
    %4 = memref.load %arg1[%c3] : memref<9xf32, #tpu.memory_space<smem>>
    %c4 = arith.constant 4 : index
    %5 = memref.load %arg1[%c4] : memref<9xf32, #tpu.memory_space<smem>>
    %6 = arith.mulf %0, %5 : f32
    %c5 = arith.constant 5 : index
    %7 = memref.load %arg1[%c5] : memref<9xf32, #tpu.memory_space<smem>>
    %8 = arith.mulf %0, %7 : f32
    %c6 = arith.constant 6 : index
    %9 = memref.load %arg1[%c6] : memref<9xf32, #tpu.memory_space<smem>>
    %c7 = arith.constant 7 : index
    %10 = memref.load %arg1[%c7] : memref<9xf32, #tpu.memory_space<smem>>
    %11 = arith.mulf %1, %1 : f32
    %cst = arith.constant 0.000000e+00 : f32
    %12 = arith.addf %cst, %11 : f32
    %13 = arith.mulf %2, %3 : f32
    %14 = arith.addf %12, %13 : f32
    %15 = arith.mulf %1, %2 : f32
    %cst_0 = arith.constant 0.000000e+00 : f32
    %16 = arith.addf %cst_0, %15 : f32
    %17 = arith.mulf %2, %4 : f32
    %18 = arith.addf %16, %17 : f32
    %19 = arith.mulf %3, %1 : f32
    %cst_1 = arith.constant 0.000000e+00 : f32
    %20 = arith.addf %cst_1, %19 : f32
    %21 = arith.mulf %4, %3 : f32
    %22 = arith.addf %20, %21 : f32
    %23 = arith.mulf %3, %2 : f32
    %cst_2 = arith.constant 0.000000e+00 : f32
    %24 = arith.addf %cst_2, %23 : f32
    %25 = arith.mulf %4, %4 : f32
    %26 = arith.addf %24, %25 : f32
    %27 = arith.mulf %1, %6 : f32
    %cst_3 = arith.constant 0.000000e+00 : f32
    %28 = arith.addf %cst_3, %27 : f32
    %29 = arith.mulf %2, %8 : f32
    %30 = arith.addf %28, %29 : f32
    %31 = arith.mulf %3, %6 : f32
    %cst_4 = arith.constant 0.000000e+00 : f32
    %32 = arith.addf %cst_4, %31 : f32
    %33 = arith.mulf %4, %8 : f32
    %34 = arith.addf %32, %33 : f32
    %c0_5 = arith.constant 0 : index
    %35 = memref.load %arg0[%c0_5] : memref<50xf32, #tpu.memory_space<smem>>
    %36 = arith.mulf %6, %35 : f32
    %37 = arith.mulf %8, %35 : f32
    %38 = arith.mulf %9, %36 : f32
    %cst_6 = arith.constant 0.000000e+00 : f32
    %39 = arith.addf %cst_6, %38 : f32
    %40 = arith.mulf %10, %37 : f32
    %41 = arith.addf %39, %40 : f32
    %c0_7 = arith.constant 0 : index
    %42 = memref.load %arg2[%c0_7] : memref<50xf32, #tpu.memory_space<smem>>
    memref.store %41, %arg2[%c0_7] : memref<50xf32, #tpu.memory_space<smem>>
    %c0_i32 = arith.constant 0 : i32
    %c2_i32 = arith.constant 2 : i32
    %43 = arith.muli %c2_i32, %c0_i32 : i32
    %c1_i32 = arith.constant 1 : i32
    %44 = arith.addi %c1_i32, %43 : i32
    %c1_i32_8 = arith.constant 1 : i32
    %45 = arith.addi %44, %c1_i32_8 : i32
    %46 = arith.index_cast %44 : i32 to index
    %47 = memref.load %arg0[%46] : memref<50xf32, #tpu.memory_space<smem>>
    %48 = arith.index_cast %45 : i32 to index
    %49 = memref.load %arg0[%48] : memref<50xf32, #tpu.memory_space<smem>>
    %50 = arith.mulf %1, %36 : f32
    %cst_9 = arith.constant 0.000000e+00 : f32
    %51 = arith.addf %cst_9, %50 : f32
    %52 = arith.mulf %2, %37 : f32
    %53 = arith.addf %51, %52 : f32
    %54 = arith.mulf %6, %47 : f32
    %55 = arith.addf %53, %54 : f32
    %56 = arith.mulf %3, %36 : f32
    %cst_10 = arith.constant 0.000000e+00 : f32
    %57 = arith.addf %cst_10, %56 : f32
    %58 = arith.mulf %4, %37 : f32
    %59 = arith.addf %57, %58 : f32
    %60 = arith.mulf %8, %47 : f32
    %61 = arith.addf %59, %60 : f32
    %62 = arith.mulf %14, %36 : f32
    %cst_11 = arith.constant 0.000000e+00 : f32
    %63 = arith.addf %cst_11, %62 : f32
    %64 = arith.mulf %18, %37 : f32
    %65 = arith.addf %63, %64 : f32
    %66 = arith.mulf %30, %47 : f32
    %67 = arith.addf %65, %66 : f32
    %68 = arith.mulf %6, %49 : f32
    %69 = arith.addf %67, %68 : f32
    %70 = arith.mulf %22, %36 : f32
    %cst_12 = arith.constant 0.000000e+00 : f32
    %71 = arith.addf %cst_12, %70 : f32
    %72 = arith.mulf %26, %37 : f32
    %73 = arith.addf %71, %72 : f32
    %74 = arith.mulf %34, %47 : f32
    %75 = arith.addf %73, %74 : f32
    %76 = arith.mulf %8, %49 : f32
    %77 = arith.addf %75, %76 : f32
    %78 = arith.mulf %9, %55 : f32
    %cst_13 = arith.constant 0.000000e+00 : f32
    %79 = arith.addf %cst_13, %78 : f32
    %80 = arith.mulf %10, %61 : f32
    %81 = arith.addf %79, %80 : f32
    %82 = arith.index_cast %44 : i32 to index
    %83 = memref.load %arg2[%82] : memref<50xf32, #tpu.memory_space<smem>>
    memref.store %81, %arg2[%82] : memref<50xf32, #tpu.memory_space<smem>>
    %84 = arith.mulf %9, %69 : f32
    %cst_14 = arith.constant 0.000000e+00 : f32
    %85 = arith.addf %cst_14, %84 : f32
    %86 = arith.mulf %10, %77 : f32
    %87 = arith.addf %85, %86 : f32
    %88 = arith.index_cast %45 : i32 to index
    %89 = memref.load %arg2[%88] : memref<50xf32, #tpu.memory_space<smem>>
    memref.store %87, %arg2[%88] : memref<50xf32, #tpu.memory_space<smem>>
    %c1_i32_15 = arith.constant 1 : i32
    %c2_i32_16 = arith.constant 2 : i32
    %90 = arith.muli %c2_i32_16, %c1_i32_15 : i32
    %c1_i32_17 = arith.constant 1 : i32
    %91 = arith.addi %c1_i32_17, %90 : i32
    %c1_i32_18 = arith.constant 1 : i32
    %92 = arith.addi %91, %c1_i32_18 : i32
    %93 = arith.index_cast %91 : i32 to index
    %94 = memref.load %arg0[%93] : memref<50xf32, #tpu.memory_space<smem>>
    %95 = arith.index_cast %92 : i32 to index
    %96 = memref.load %arg0[%95] : memref<50xf32, #tpu.memory_space<smem>>
    %97 = arith.mulf %1, %69 : f32
    %cst_19 = arith.constant 0.000000e+00 : f32
    %98 = arith.addf %cst_19, %97 : f32
    %99 = arith.mulf %2, %77 : f32
    %100 = arith.addf %98, %99 : f32
    %101 = arith.mulf %6, %94 : f32
    %102 = arith.addf %100, %101 : f32
    %103 = arith.mulf %3, %69 : f32
    %cst_20 = arith.constant 0.000000e+00 : f32
    %104 = arith.addf %cst_20, %103 : f32
    %105 = arith.mulf %4, %77 : f32
    %106 = arith.addf %104, %105 : f32
    %107 = arith.mulf %8, %94 : f32
    %108 = arith.addf %106, %107 : f32
    %109 = arith.mulf %14, %69 : f32
    %cst_21 = arith.constant 0.000000e+00 : f32
    %110 = arith.addf %cst_21, %109 : f32
    %111 = arith.mulf %18, %77 : f32
    %112 = arith.addf %110, %111 : f32
    %113 = arith.mulf %30, %94 : f32
    %114 = arith.addf %112, %113 : f32
    %115 = arith.mulf %6, %96 : f32
    %116 = arith.addf %114, %115 : f32
    %117 = arith.mulf %22, %69 : f32
    %cst_22 = arith.constant 0.000000e+00 : f32
    %118 = arith.addf %cst_22, %117 : f32
    %119 = arith.mulf %26, %77 : f32
    %120 = arith.addf %118, %119 : f32
    %121 = arith.mulf %34, %94 : f32
    %122 = arith.addf %120, %121 : f32
    %123 = arith.mulf %8, %96 : f32
    %124 = arith.addf %122, %123 : f32
    %125 = arith.mulf %9, %102 : f32
    %cst_23 = arith.constant 0.000000e+00 : f32
    %126 = arith.addf %cst_23, %125 : f32
    %127 = arith.mulf %10, %108 : f32
    %128 = arith.addf %126, %127 : f32
    %129 = arith.index_cast %91 : i32 to index
    %130 = memref.load %arg2[%129] : memref<50xf32, #tpu.memory_space<smem>>
    memref.store %128, %arg2[%129] : memref<50xf32, #tpu.memory_space<smem>>
    %131 = arith.mulf %9, %116 : f32
    %cst_24 = arith.constant 0.000000e+00 : f32
    %132 = arith.addf %cst_24, %131 : f32
    %133 = arith.mulf %10, %124 : f32
    %134 = arith.addf %132, %133 : f32
    %135 = arith.index_cast %92 : i32 to index
    %136 = memref.load %arg2[%135] : memref<50xf32, #tpu.memory_space<smem>>
    memref.store %134, %arg2[%135] : memref<50xf32, #tpu.memory_space<smem>>
    %c2_i32_25 = arith.constant 2 : i32
    %c2_i32_26 = arith.constant 2 : i32
    %137 = arith.muli %c2_i32_26, %c2_i32_25 : i32
    %c1_i32_27 = arith.constant 1 : i32
    %138 = arith.addi %c1_i32_27, %137 : i32
    %c1_i32_28 = arith.constant 1 : i32
    %139 = arith.addi %138, %c1_i32_28 : i32
    %140 = arith.index_cast %138 : i32 to index
    %141 = memref.load %arg0[%140] : memref<50xf32, #tpu.memory_space<smem>>
    %142 = arith.index_cast %139 : i32 to index
    %143 = memref.load %arg0[%142] : memref<50xf32, #tpu.memory_space<smem>>
    %144 = arith.mulf %1, %116 : f32
    %cst_29 = arith.constant 0.000000e+00 : f32
    %145 = arith.addf %cst_29, %144 : f32
    %146 = arith.mulf %2, %124 : f32
    %147 = arith.addf %145, %146 : f32
    %148 = arith.mulf %6, %141 : f32
    %149 = arith.addf %147, %148 : f32
    %150 = arith.mulf %3, %116 : f32
    %cst_30 = arith.constant 0.000000e+00 : f32
    %151 = arith.addf %cst_30, %150 : f32
    %152 = arith.mulf %4, %124 : f32
    %153 = arith.addf %151, %152 : f32
    %154 = arith.mulf %8, %141 : f32
    %155 = arith.addf %153, %154 : f32
    %156 = arith.mulf %14, %116 : f32
    %cst_31 = arith.constant 0.000000e+00 : f32
    %157 = arith.addf %cst_31, %156 : f32
    %158 = arith.mulf %18, %124 : f32
    %159 = arith.addf %157, %158 : f32
    %160 = arith.mulf %30, %141 : f32
    %161 = arith.addf %159, %160 : f32
    %162 = arith.mulf %6, %143 : f32
    %163 = arith.addf %161, %162 : f32
    %164 = arith.mulf %22, %116 : f32
    %cst_32 = arith.constant 0.000000e+00 : f32
    %165 = arith.addf %cst_32, %164 : f32
    %166 = arith.mulf %26, %124 : f32
    %167 = arith.addf %165, %166 : f32
    %168 = arith.mulf %34, %141 : f32
    %169 = arith.addf %167, %168 : f32
    %170 = arith.mulf %8, %143 : f32
    %171 = arith.addf %169, %170 : f32
    %172 = arith.mulf %9, %149 : f32
    %cst_33 = arith.constant 0.000000e+00 : f32
    %173 = arith.addf %cst_33, %172 : f32
    %174 = arith.mulf %10, %155 : f32
    %175 = arith.addf %173, %174 : f32
    %176 = arith.index_cast %138 : i32 to index
    %177 = memref.load %arg2[%176] : memref<50xf32, #tpu.memory_space<smem>>
    memref.store %175, %arg2[%176] : memref<50xf32, #tpu.memory_space<smem>>
    %178 = arith.mulf %9, %163 : f32
    %cst_34 = arith.constant 0.000000e+00 : f32
    %179 = arith.addf %cst_34, %178 : f32
    %180 = arith.mulf %10, %171 : f32
    %181 = arith.addf %179, %180 : f32
    %182 = arith.index_cast %139 : i32 to index
    %183 = memref.load %arg2[%182] : memref<50xf32, #tpu.memory_space<smem>>
    memref.store %181, %arg2[%182] : memref<50xf32, #tpu.memory_space<smem>>
    %c3_i32 = arith.constant 3 : i32
    %c2_i32_35 = arith.constant 2 : i32
    %184 = arith.muli %c2_i32_35, %c3_i32 : i32
    %c1_i32_36 = arith.constant 1 : i32
    %185 = arith.addi %c1_i32_36, %184 : i32
    %c1_i32_37 = arith.constant 1 : i32
    %186 = arith.addi %185, %c1_i32_37 : i32
    %187 = arith.index_cast %185 : i32 to index
    %188 = memref.load %arg0[%187] : memref<50xf32, #tpu.memory_space<smem>>
    %189 = arith.index_cast %186 : i32 to index
    %190 = memref.load %arg0[%189] : memref<50xf32, #tpu.memory_space<smem>>
    %191 = arith.mulf %1, %163 : f32
    %cst_38 = arith.constant 0.000000e+00 : f32
    %192 = arith.addf %cst_38, %191 : f32
    %193 = arith.mulf %2, %171 : f32
    %194 = arith.addf %192, %193 : f32
    %195 = arith.mulf %6, %188 : f32
    %196 = arith.addf %194, %195 : f32
    %197 = arith.mulf %3, %163 : f32
    %cst_39 = arith.constant 0.000000e+00 : f32
    %198 = arith.addf %cst_39, %197 : f32
    %199 = arith.mulf %4, %171 : f32
    %200 = arith.addf %198, %199 : f32
    %201 = arith.mulf %8, %188 : f32
    %202 = arith.addf %200, %201 : f32
    %203 = arith.mulf %14, %163 : f32
    %cst_40 = arith.constant 0.000000e+00 : f32
    %204 = arith.addf %cst_40, %203 : f32
    %205 = arith.mulf %18, %171 : f32
    %206 = arith.addf %204, %205 : f32
    %207 = arith.mulf %30, %188 : f32
    %208 = arith.addf %206, %207 : f32
    %209 = arith.mulf %6, %190 : f32
    %210 = arith.addf %208, %209 : f32
    %211 = arith.mulf %22, %163 : f32
    %cst_41 = arith.constant 0.000000e+00 : f32
    %212 = arith.addf %cst_41, %211 : f32
    %213 = arith.mulf %26, %171 : f32
    %214 = arith.addf %212, %213 : f32
    %215 = arith.mulf %34, %188 : f32
    %216 = arith.addf %214, %215 : f32
    %217 = arith.mulf %8, %190 : f32
    %218 = arith.addf %216, %217 : f32
    %219 = arith.mulf %9, %196 : f32
    %cst_42 = arith.constant 0.000000e+00 : f32
    %220 = arith.addf %cst_42, %219 : f32
    %221 = arith.mulf %10, %202 : f32
    %222 = arith.addf %220, %221 : f32
    %223 = arith.index_cast %185 : i32 to index
    %224 = memref.load %arg2[%223] : memref<50xf32, #tpu.memory_space<smem>>
    memref.store %222, %arg2[%223] : memref<50xf32, #tpu.memory_space<smem>>
    %225 = arith.mulf %9, %210 : f32
    %cst_43 = arith.constant 0.000000e+00 : f32
    %226 = arith.addf %cst_43, %225 : f32
    %227 = arith.mulf %10, %218 : f32
    %228 = arith.addf %226, %227 : f32
    %229 = arith.index_cast %186 : i32 to index
    %230 = memref.load %arg2[%229] : memref<50xf32, #tpu.memory_space<smem>>
    memref.store %228, %arg2[%229] : memref<50xf32, #tpu.memory_space<smem>>
    %c4_i32 = arith.constant 4 : i32
    %c2_i32_44 = arith.constant 2 : i32
    %231 = arith.muli %c2_i32_44, %c4_i32 : i32
    %c1_i32_45 = arith.constant 1 : i32
    %232 = arith.addi %c1_i32_45, %231 : i32
    %c1_i32_46 = arith.constant 1 : i32
    %233 = arith.addi %232, %c1_i32_46 : i32
    %234 = arith.index_cast %232 : i32 to index
    %235 = memref.load %arg0[%234] : memref<50xf32, #tpu.memory_space<smem>>
    %236 = arith.index_cast %233 : i32 to index
    %237 = memref.load %arg0[%236] : memref<50xf32, #tpu.memory_space<smem>>
    %238 = arith.mulf %1, %210 : f32
    %cst_47 = arith.constant 0.000000e+00 : f32
    %239 = arith.addf %cst_47, %238 : f32
    %240 = arith.mulf %2, %218 : f32
    %241 = arith.addf %239, %240 : f32
    %242 = arith.mulf %6, %235 : f32
    %243 = arith.addf %241, %242 : f32
    %244 = arith.mulf %3, %210 : f32
    %cst_48 = arith.constant 0.000000e+00 : f32
    %245 = arith.addf %cst_48, %244 : f32
    %246 = arith.mulf %4, %218 : f32
    %247 = arith.addf %245, %246 : f32
    %248 = arith.mulf %8, %235 : f32
    %249 = arith.addf %247, %248 : f32
    %250 = arith.mulf %14, %210 : f32
    %cst_49 = arith.constant 0.000000e+00 : f32
    %251 = arith.addf %cst_49, %250 : f32
    %252 = arith.mulf %18, %218 : f32
    %253 = arith.addf %251, %252 : f32
    %254 = arith.mulf %30, %235 : f32
    %255 = arith.addf %253, %254 : f32
    %256 = arith.mulf %6, %237 : f32
    %257 = arith.addf %255, %256 : f32
    %258 = arith.mulf %22, %210 : f32
    %cst_50 = arith.constant 0.000000e+00 : f32
    %259 = arith.addf %cst_50, %258 : f32
    %260 = arith.mulf %26, %218 : f32
    %261 = arith.addf %259, %260 : f32
    %262 = arith.mulf %34, %235 : f32
    %263 = arith.addf %261, %262 : f32
    %264 = arith.mulf %8, %237 : f32
    %265 = arith.addf %263, %264 : f32
    %266 = arith.mulf %9, %243 : f32
    %cst_51 = arith.constant 0.000000e+00 : f32
    %267 = arith.addf %cst_51, %266 : f32
    %268 = arith.mulf %10, %249 : f32
    %269 = arith.addf %267, %268 : f32
    %270 = arith.index_cast %232 : i32 to index
    %271 = memref.load %arg2[%270] : memref<50xf32, #tpu.memory_space<smem>>
    memref.store %269, %arg2[%270] : memref<50xf32, #tpu.memory_space<smem>>
    %272 = arith.mulf %9, %257 : f32
    %cst_52 = arith.constant 0.000000e+00 : f32
    %273 = arith.addf %cst_52, %272 : f32
    %274 = arith.mulf %10, %265 : f32
    %275 = arith.addf %273, %274 : f32
    %276 = arith.index_cast %233 : i32 to index
    %277 = memref.load %arg2[%276] : memref<50xf32, #tpu.memory_space<smem>>
    memref.store %275, %arg2[%276] : memref<50xf32, #tpu.memory_space<smem>>
    %c5_i32 = arith.constant 5 : i32
    %c2_i32_53 = arith.constant 2 : i32
    %278 = arith.muli %c2_i32_53, %c5_i32 : i32
    %c1_i32_54 = arith.constant 1 : i32
    %279 = arith.addi %c1_i32_54, %278 : i32
    %c1_i32_55 = arith.constant 1 : i32
    %280 = arith.addi %279, %c1_i32_55 : i32
    %281 = arith.index_cast %279 : i32 to index
    %282 = memref.load %arg0[%281] : memref<50xf32, #tpu.memory_space<smem>>
    %283 = arith.index_cast %280 : i32 to index
    %284 = memref.load %arg0[%283] : memref<50xf32, #tpu.memory_space<smem>>
    %285 = arith.mulf %1, %257 : f32
    %cst_56 = arith.constant 0.000000e+00 : f32
    %286 = arith.addf %cst_56, %285 : f32
    %287 = arith.mulf %2, %265 : f32
    %288 = arith.addf %286, %287 : f32
    %289 = arith.mulf %6, %282 : f32
    %290 = arith.addf %288, %289 : f32
    %291 = arith.mulf %3, %257 : f32
    %cst_57 = arith.constant 0.000000e+00 : f32
    %292 = arith.addf %cst_57, %291 : f32
    %293 = arith.mulf %4, %265 : f32
    %294 = arith.addf %292, %293 : f32
    %295 = arith.mulf %8, %282 : f32
    %296 = arith.addf %294, %295 : f32
    %297 = arith.mulf %14, %257 : f32
    %cst_58 = arith.constant 0.000000e+00 : f32
    %298 = arith.addf %cst_58, %297 : f32
    %299 = arith.mulf %18, %265 : f32
    %300 = arith.addf %298, %299 : f32
    %301 = arith.mulf %30, %282 : f32
    %302 = arith.addf %300, %301 : f32
    %303 = arith.mulf %6, %284 : f32
    %304 = arith.addf %302, %303 : f32
    %305 = arith.mulf %22, %257 : f32
    %cst_59 = arith.constant 0.000000e+00 : f32
    %306 = arith.addf %cst_59, %305 : f32
    %307 = arith.mulf %26, %265 : f32
    %308 = arith.addf %306, %307 : f32
    %309 = arith.mulf %34, %282 : f32
    %310 = arith.addf %308, %309 : f32
    %311 = arith.mulf %8, %284 : f32
    %312 = arith.addf %310, %311 : f32
    %313 = arith.mulf %9, %290 : f32
    %cst_60 = arith.constant 0.000000e+00 : f32
    %314 = arith.addf %cst_60, %313 : f32
    %315 = arith.mulf %10, %296 : f32
    %316 = arith.addf %314, %315 : f32
    %317 = arith.index_cast %279 : i32 to index
    %318 = memref.load %arg2[%317] : memref<50xf32, #tpu.memory_space<smem>>
    memref.store %316, %arg2[%317] : memref<50xf32, #tpu.memory_space<smem>>
    %319 = arith.mulf %9, %304 : f32
    %cst_61 = arith.constant 0.000000e+00 : f32
    %320 = arith.addf %cst_61, %319 : f32
    %321 = arith.mulf %10, %312 : f32
    %322 = arith.addf %320, %321 : f32
    %323 = arith.index_cast %280 : i32 to index
    %324 = memref.load %arg2[%323] : memref<50xf32, #tpu.memory_space<smem>>
    memref.store %322, %arg2[%323] : memref<50xf32, #tpu.memory_space<smem>>
    %c6_i32 = arith.constant 6 : i32
    %c2_i32_62 = arith.constant 2 : i32
    %325 = arith.muli %c2_i32_62, %c6_i32 : i32
    %c1_i32_63 = arith.constant 1 : i32
    %326 = arith.addi %c1_i32_63, %325 : i32
    %c1_i32_64 = arith.constant 1 : i32
    %327 = arith.addi %326, %c1_i32_64 : i32
    %328 = arith.index_cast %326 : i32 to index
    %329 = memref.load %arg0[%328] : memref<50xf32, #tpu.memory_space<smem>>
    %330 = arith.index_cast %327 : i32 to index
    %331 = memref.load %arg0[%330] : memref<50xf32, #tpu.memory_space<smem>>
    %332 = arith.mulf %1, %304 : f32
    %cst_65 = arith.constant 0.000000e+00 : f32
    %333 = arith.addf %cst_65, %332 : f32
    %334 = arith.mulf %2, %312 : f32
    %335 = arith.addf %333, %334 : f32
    %336 = arith.mulf %6, %329 : f32
    %337 = arith.addf %335, %336 : f32
    %338 = arith.mulf %3, %304 : f32
    %cst_66 = arith.constant 0.000000e+00 : f32
    %339 = arith.addf %cst_66, %338 : f32
    %340 = arith.mulf %4, %312 : f32
    %341 = arith.addf %339, %340 : f32
    %342 = arith.mulf %8, %329 : f32
    %343 = arith.addf %341, %342 : f32
    %344 = arith.mulf %14, %304 : f32
    %cst_67 = arith.constant 0.000000e+00 : f32
    %345 = arith.addf %cst_67, %344 : f32
    %346 = arith.mulf %18, %312 : f32
    %347 = arith.addf %345, %346 : f32
    %348 = arith.mulf %30, %329 : f32
    %349 = arith.addf %347, %348 : f32
    %350 = arith.mulf %6, %331 : f32
    %351 = arith.addf %349, %350 : f32
    %352 = arith.mulf %22, %304 : f32
    %cst_68 = arith.constant 0.000000e+00 : f32
    %353 = arith.addf %cst_68, %352 : f32
    %354 = arith.mulf %26, %312 : f32
    %355 = arith.addf %353, %354 : f32
    %356 = arith.mulf %34, %329 : f32
    %357 = arith.addf %355, %356 : f32
    %358 = arith.mulf %8, %331 : f32
    %359 = arith.addf %357, %358 : f32
    %360 = arith.mulf %9, %337 : f32
    %cst_69 = arith.constant 0.000000e+00 : f32
    %361 = arith.addf %cst_69, %360 : f32
    %362 = arith.mulf %10, %343 : f32
    %363 = arith.addf %361, %362 : f32
    %364 = arith.index_cast %326 : i32 to index
    %365 = memref.load %arg2[%364] : memref<50xf32, #tpu.memory_space<smem>>
    memref.store %363, %arg2[%364] : memref<50xf32, #tpu.memory_space<smem>>
    %366 = arith.mulf %9, %351 : f32
    %cst_70 = arith.constant 0.000000e+00 : f32
    %367 = arith.addf %cst_70, %366 : f32
    %368 = arith.mulf %10, %359 : f32
    %369 = arith.addf %367, %368 : f32
    %370 = arith.index_cast %327 : i32 to index
    %371 = memref.load %arg2[%370] : memref<50xf32, #tpu.memory_space<smem>>
    memref.store %369, %arg2[%370] : memref<50xf32, #tpu.memory_space<smem>>
    %c7_i32 = arith.constant 7 : i32
    %c2_i32_71 = arith.constant 2 : i32
    %372 = arith.muli %c2_i32_71, %c7_i32 : i32
    %c1_i32_72 = arith.constant 1 : i32
    %373 = arith.addi %c1_i32_72, %372 : i32
    %c1_i32_73 = arith.constant 1 : i32
    %374 = arith.addi %373, %c1_i32_73 : i32
    %375 = arith.index_cast %373 : i32 to index
    %376 = memref.load %arg0[%375] : memref<50xf32, #tpu.memory_space<smem>>
    %377 = arith.index_cast %374 : i32 to index
    %378 = memref.load %arg0[%377] : memref<50xf32, #tpu.memory_space<smem>>
    %379 = arith.mulf %1, %351 : f32
    %cst_74 = arith.constant 0.000000e+00 : f32
    %380 = arith.addf %cst_74, %379 : f32
    %381 = arith.mulf %2, %359 : f32
    %382 = arith.addf %380, %381 : f32
    %383 = arith.mulf %6, %376 : f32
    %384 = arith.addf %382, %383 : f32
    %385 = arith.mulf %3, %351 : f32
    %cst_75 = arith.constant 0.000000e+00 : f32
    %386 = arith.addf %cst_75, %385 : f32
    %387 = arith.mulf %4, %359 : f32
    %388 = arith.addf %386, %387 : f32
    %389 = arith.mulf %8, %376 : f32
    %390 = arith.addf %388, %389 : f32
    %391 = arith.mulf %14, %351 : f32
    %cst_76 = arith.constant 0.000000e+00 : f32
    %392 = arith.addf %cst_76, %391 : f32
    %393 = arith.mulf %18, %359 : f32
    %394 = arith.addf %392, %393 : f32
    %395 = arith.mulf %30, %376 : f32
    %396 = arith.addf %394, %395 : f32
    %397 = arith.mulf %6, %378 : f32
    %398 = arith.addf %396, %397 : f32
    %399 = arith.mulf %22, %351 : f32
    %cst_77 = arith.constant 0.000000e+00 : f32
    %400 = arith.addf %cst_77, %399 : f32
    %401 = arith.mulf %26, %359 : f32
    %402 = arith.addf %400, %401 : f32
    %403 = arith.mulf %34, %376 : f32
    %404 = arith.addf %402, %403 : f32
    %405 = arith.mulf %8, %378 : f32
    %406 = arith.addf %404, %405 : f32
    %407 = arith.mulf %9, %384 : f32
    %cst_78 = arith.constant 0.000000e+00 : f32
    %408 = arith.addf %cst_78, %407 : f32
    %409 = arith.mulf %10, %390 : f32
    %410 = arith.addf %408, %409 : f32
    %411 = arith.index_cast %373 : i32 to index
    %412 = memref.load %arg2[%411] : memref<50xf32, #tpu.memory_space<smem>>
    memref.store %410, %arg2[%411] : memref<50xf32, #tpu.memory_space<smem>>
    %413 = arith.mulf %9, %398 : f32
    %cst_79 = arith.constant 0.000000e+00 : f32
    %414 = arith.addf %cst_79, %413 : f32
    %415 = arith.mulf %10, %406 : f32
    %416 = arith.addf %414, %415 : f32
    %417 = arith.index_cast %374 : i32 to index
    %418 = memref.load %arg2[%417] : memref<50xf32, #tpu.memory_space<smem>>
    memref.store %416, %arg2[%417] : memref<50xf32, #tpu.memory_space<smem>>
    %c8_i32 = arith.constant 8 : i32
    %c2_i32_80 = arith.constant 2 : i32
    %419 = arith.muli %c2_i32_80, %c8_i32 : i32
    %c1_i32_81 = arith.constant 1 : i32
    %420 = arith.addi %c1_i32_81, %419 : i32
    %c1_i32_82 = arith.constant 1 : i32
    %421 = arith.addi %420, %c1_i32_82 : i32
    %422 = arith.index_cast %420 : i32 to index
    %423 = memref.load %arg0[%422] : memref<50xf32, #tpu.memory_space<smem>>
    %424 = arith.index_cast %421 : i32 to index
    %425 = memref.load %arg0[%424] : memref<50xf32, #tpu.memory_space<smem>>
    %426 = arith.mulf %1, %398 : f32
    %cst_83 = arith.constant 0.000000e+00 : f32
    %427 = arith.addf %cst_83, %426 : f32
    %428 = arith.mulf %2, %406 : f32
    %429 = arith.addf %427, %428 : f32
    %430 = arith.mulf %6, %423 : f32
    %431 = arith.addf %429, %430 : f32
    %432 = arith.mulf %3, %398 : f32
    %cst_84 = arith.constant 0.000000e+00 : f32
    %433 = arith.addf %cst_84, %432 : f32
    %434 = arith.mulf %4, %406 : f32
    %435 = arith.addf %433, %434 : f32
    %436 = arith.mulf %8, %423 : f32
    %437 = arith.addf %435, %436 : f32
    %438 = arith.mulf %14, %398 : f32
    %cst_85 = arith.constant 0.000000e+00 : f32
    %439 = arith.addf %cst_85, %438 : f32
    %440 = arith.mulf %18, %406 : f32
    %441 = arith.addf %439, %440 : f32
    %442 = arith.mulf %30, %423 : f32
    %443 = arith.addf %441, %442 : f32
    %444 = arith.mulf %6, %425 : f32
    %445 = arith.addf %443, %444 : f32
    %446 = arith.mulf %22, %398 : f32
    %cst_86 = arith.constant 0.000000e+00 : f32
    %447 = arith.addf %cst_86, %446 : f32
    %448 = arith.mulf %26, %406 : f32
    %449 = arith.addf %447, %448 : f32
    %450 = arith.mulf %34, %423 : f32
    %451 = arith.addf %449, %450 : f32
    %452 = arith.mulf %8, %425 : f32
    %453 = arith.addf %451, %452 : f32
    %454 = arith.mulf %9, %431 : f32
    %cst_87 = arith.constant 0.000000e+00 : f32
    %455 = arith.addf %cst_87, %454 : f32
    %456 = arith.mulf %10, %437 : f32
    %457 = arith.addf %455, %456 : f32
    %458 = arith.index_cast %420 : i32 to index
    %459 = memref.load %arg2[%458] : memref<50xf32, #tpu.memory_space<smem>>
    memref.store %457, %arg2[%458] : memref<50xf32, #tpu.memory_space<smem>>
    %460 = arith.mulf %9, %445 : f32
    %cst_88 = arith.constant 0.000000e+00 : f32
    %461 = arith.addf %cst_88, %460 : f32
    %462 = arith.mulf %10, %453 : f32
    %463 = arith.addf %461, %462 : f32
    %464 = arith.index_cast %421 : i32 to index
    %465 = memref.load %arg2[%464] : memref<50xf32, #tpu.memory_space<smem>>
    memref.store %463, %arg2[%464] : memref<50xf32, #tpu.memory_space<smem>>
    %c9_i32 = arith.constant 9 : i32
    %c2_i32_89 = arith.constant 2 : i32
    %466 = arith.muli %c2_i32_89, %c9_i32 : i32
    %c1_i32_90 = arith.constant 1 : i32
    %467 = arith.addi %c1_i32_90, %466 : i32
    %c1_i32_91 = arith.constant 1 : i32
    %468 = arith.addi %467, %c1_i32_91 : i32
    %469 = arith.index_cast %467 : i32 to index
    %470 = memref.load %arg0[%469] : memref<50xf32, #tpu.memory_space<smem>>
    %471 = arith.index_cast %468 : i32 to index
    %472 = memref.load %arg0[%471] : memref<50xf32, #tpu.memory_space<smem>>
    %473 = arith.mulf %1, %445 : f32
    %cst_92 = arith.constant 0.000000e+00 : f32
    %474 = arith.addf %cst_92, %473 : f32
    %475 = arith.mulf %2, %453 : f32
    %476 = arith.addf %474, %475 : f32
    %477 = arith.mulf %6, %470 : f32
    %478 = arith.addf %476, %477 : f32
    %479 = arith.mulf %3, %445 : f32
    %cst_93 = arith.constant 0.000000e+00 : f32
    %480 = arith.addf %cst_93, %479 : f32
    %481 = arith.mulf %4, %453 : f32
    %482 = arith.addf %480, %481 : f32
    %483 = arith.mulf %8, %470 : f32
    %484 = arith.addf %482, %483 : f32
    %485 = arith.mulf %14, %445 : f32
    %cst_94 = arith.constant 0.000000e+00 : f32
    %486 = arith.addf %cst_94, %485 : f32
    %487 = arith.mulf %18, %453 : f32
    %488 = arith.addf %486, %487 : f32
    %489 = arith.mulf %30, %470 : f32
    %490 = arith.addf %488, %489 : f32
    %491 = arith.mulf %6, %472 : f32
    %492 = arith.addf %490, %491 : f32
    %493 = arith.mulf %22, %445 : f32
    %cst_95 = arith.constant 0.000000e+00 : f32
    %494 = arith.addf %cst_95, %493 : f32
    %495 = arith.mulf %26, %453 : f32
    %496 = arith.addf %494, %495 : f32
    %497 = arith.mulf %34, %470 : f32
    %498 = arith.addf %496, %497 : f32
    %499 = arith.mulf %8, %472 : f32
    %500 = arith.addf %498, %499 : f32
    %501 = arith.mulf %9, %478 : f32
    %cst_96 = arith.constant 0.000000e+00 : f32
    %502 = arith.addf %cst_96, %501 : f32
    %503 = arith.mulf %10, %484 : f32
    %504 = arith.addf %502, %503 : f32
    %505 = arith.index_cast %467 : i32 to index
    %506 = memref.load %arg2[%505] : memref<50xf32, #tpu.memory_space<smem>>
    memref.store %504, %arg2[%505] : memref<50xf32, #tpu.memory_space<smem>>
    %507 = arith.mulf %9, %492 : f32
    %cst_97 = arith.constant 0.000000e+00 : f32
    %508 = arith.addf %cst_97, %507 : f32
    %509 = arith.mulf %10, %500 : f32
    %510 = arith.addf %508, %509 : f32
    %511 = arith.index_cast %468 : i32 to index
    %512 = memref.load %arg2[%511] : memref<50xf32, #tpu.memory_space<smem>>
    memref.store %510, %arg2[%511] : memref<50xf32, #tpu.memory_space<smem>>
    %c10_i32 = arith.constant 10 : i32
    %c2_i32_98 = arith.constant 2 : i32
    %513 = arith.muli %c2_i32_98, %c10_i32 : i32
    %c1_i32_99 = arith.constant 1 : i32
    %514 = arith.addi %c1_i32_99, %513 : i32
    %c1_i32_100 = arith.constant 1 : i32
    %515 = arith.addi %514, %c1_i32_100 : i32
    %516 = arith.index_cast %514 : i32 to index
    %517 = memref.load %arg0[%516] : memref<50xf32, #tpu.memory_space<smem>>
    %518 = arith.index_cast %515 : i32 to index
    %519 = memref.load %arg0[%518] : memref<50xf32, #tpu.memory_space<smem>>
    %520 = arith.mulf %1, %492 : f32
    %cst_101 = arith.constant 0.000000e+00 : f32
    %521 = arith.addf %cst_101, %520 : f32
    %522 = arith.mulf %2, %500 : f32
    %523 = arith.addf %521, %522 : f32
    %524 = arith.mulf %6, %517 : f32
    %525 = arith.addf %523, %524 : f32
    %526 = arith.mulf %3, %492 : f32
    %cst_102 = arith.constant 0.000000e+00 : f32
    %527 = arith.addf %cst_102, %526 : f32
    %528 = arith.mulf %4, %500 : f32
    %529 = arith.addf %527, %528 : f32
    %530 = arith.mulf %8, %517 : f32
    %531 = arith.addf %529, %530 : f32
    %532 = arith.mulf %14, %492 : f32
    %cst_103 = arith.constant 0.000000e+00 : f32
    %533 = arith.addf %cst_103, %532 : f32
    %534 = arith.mulf %18, %500 : f32
    %535 = arith.addf %533, %534 : f32
    %536 = arith.mulf %30, %517 : f32
    %537 = arith.addf %535, %536 : f32
    %538 = arith.mulf %6, %519 : f32
    %539 = arith.addf %537, %538 : f32
    %540 = arith.mulf %22, %492 : f32
    %cst_104 = arith.constant 0.000000e+00 : f32
    %541 = arith.addf %cst_104, %540 : f32
    %542 = arith.mulf %26, %500 : f32
    %543 = arith.addf %541, %542 : f32
    %544 = arith.mulf %34, %517 : f32
    %545 = arith.addf %543, %544 : f32
    %546 = arith.mulf %8, %519 : f32
    %547 = arith.addf %545, %546 : f32
    %548 = arith.mulf %9, %525 : f32
    %cst_105 = arith.constant 0.000000e+00 : f32
    %549 = arith.addf %cst_105, %548 : f32
    %550 = arith.mulf %10, %531 : f32
    %551 = arith.addf %549, %550 : f32
    %552 = arith.index_cast %514 : i32 to index
    %553 = memref.load %arg2[%552] : memref<50xf32, #tpu.memory_space<smem>>
    memref.store %551, %arg2[%552] : memref<50xf32, #tpu.memory_space<smem>>
    %554 = arith.mulf %9, %539 : f32
    %cst_106 = arith.constant 0.000000e+00 : f32
    %555 = arith.addf %cst_106, %554 : f32
    %556 = arith.mulf %10, %547 : f32
    %557 = arith.addf %555, %556 : f32
    %558 = arith.index_cast %515 : i32 to index
    %559 = memref.load %arg2[%558] : memref<50xf32, #tpu.memory_space<smem>>
    memref.store %557, %arg2[%558] : memref<50xf32, #tpu.memory_space<smem>>
    %c11_i32 = arith.constant 11 : i32
    %c2_i32_107 = arith.constant 2 : i32
    %560 = arith.muli %c2_i32_107, %c11_i32 : i32
    %c1_i32_108 = arith.constant 1 : i32
    %561 = arith.addi %c1_i32_108, %560 : i32
    %c1_i32_109 = arith.constant 1 : i32
    %562 = arith.addi %561, %c1_i32_109 : i32
    %563 = arith.index_cast %561 : i32 to index
    %564 = memref.load %arg0[%563] : memref<50xf32, #tpu.memory_space<smem>>
    %565 = arith.index_cast %562 : i32 to index
    %566 = memref.load %arg0[%565] : memref<50xf32, #tpu.memory_space<smem>>
    %567 = arith.mulf %1, %539 : f32
    %cst_110 = arith.constant 0.000000e+00 : f32
    %568 = arith.addf %cst_110, %567 : f32
    %569 = arith.mulf %2, %547 : f32
    %570 = arith.addf %568, %569 : f32
    %571 = arith.mulf %6, %564 : f32
    %572 = arith.addf %570, %571 : f32
    %573 = arith.mulf %3, %539 : f32
    %cst_111 = arith.constant 0.000000e+00 : f32
    %574 = arith.addf %cst_111, %573 : f32
    %575 = arith.mulf %4, %547 : f32
    %576 = arith.addf %574, %575 : f32
    %577 = arith.mulf %8, %564 : f32
    %578 = arith.addf %576, %577 : f32
    %579 = arith.mulf %14, %539 : f32
    %cst_112 = arith.constant 0.000000e+00 : f32
    %580 = arith.addf %cst_112, %579 : f32
    %581 = arith.mulf %18, %547 : f32
    %582 = arith.addf %580, %581 : f32
    %583 = arith.mulf %30, %564 : f32
    %584 = arith.addf %582, %583 : f32
    %585 = arith.mulf %6, %566 : f32
    %586 = arith.addf %584, %585 : f32
    %587 = arith.mulf %22, %539 : f32
    %cst_113 = arith.constant 0.000000e+00 : f32
    %588 = arith.addf %cst_113, %587 : f32
    %589 = arith.mulf %26, %547 : f32
    %590 = arith.addf %588, %589 : f32
    %591 = arith.mulf %34, %564 : f32
    %592 = arith.addf %590, %591 : f32
    %593 = arith.mulf %8, %566 : f32
    %594 = arith.addf %592, %593 : f32
    %595 = arith.mulf %9, %572 : f32
    %cst_114 = arith.constant 0.000000e+00 : f32
    %596 = arith.addf %cst_114, %595 : f32
    %597 = arith.mulf %10, %578 : f32
    %598 = arith.addf %596, %597 : f32
    %599 = arith.index_cast %561 : i32 to index
    %600 = memref.load %arg2[%599] : memref<50xf32, #tpu.memory_space<smem>>
    memref.store %598, %arg2[%599] : memref<50xf32, #tpu.memory_space<smem>>
    %601 = arith.mulf %9, %586 : f32
    %cst_115 = arith.constant 0.000000e+00 : f32
    %602 = arith.addf %cst_115, %601 : f32
    %603 = arith.mulf %10, %594 : f32
    %604 = arith.addf %602, %603 : f32
    %605 = arith.index_cast %562 : i32 to index
    %606 = memref.load %arg2[%605] : memref<50xf32, #tpu.memory_space<smem>>
    memref.store %604, %arg2[%605] : memref<50xf32, #tpu.memory_space<smem>>
    %c12_i32 = arith.constant 12 : i32
    %c2_i32_116 = arith.constant 2 : i32
    %607 = arith.muli %c2_i32_116, %c12_i32 : i32
    %c1_i32_117 = arith.constant 1 : i32
    %608 = arith.addi %c1_i32_117, %607 : i32
    %c1_i32_118 = arith.constant 1 : i32
    %609 = arith.addi %608, %c1_i32_118 : i32
    %610 = arith.index_cast %608 : i32 to index
    %611 = memref.load %arg0[%610] : memref<50xf32, #tpu.memory_space<smem>>
    %612 = arith.index_cast %609 : i32 to index
    %613 = memref.load %arg0[%612] : memref<50xf32, #tpu.memory_space<smem>>
    %614 = arith.mulf %1, %586 : f32
    %cst_119 = arith.constant 0.000000e+00 : f32
    %615 = arith.addf %cst_119, %614 : f32
    %616 = arith.mulf %2, %594 : f32
    %617 = arith.addf %615, %616 : f32
    %618 = arith.mulf %6, %611 : f32
    %619 = arith.addf %617, %618 : f32
    %620 = arith.mulf %3, %586 : f32
    %cst_120 = arith.constant 0.000000e+00 : f32
    %621 = arith.addf %cst_120, %620 : f32
    %622 = arith.mulf %4, %594 : f32
    %623 = arith.addf %621, %622 : f32
    %624 = arith.mulf %8, %611 : f32
    %625 = arith.addf %623, %624 : f32
    %626 = arith.mulf %14, %586 : f32
    %cst_121 = arith.constant 0.000000e+00 : f32
    %627 = arith.addf %cst_121, %626 : f32
    %628 = arith.mulf %18, %594 : f32
    %629 = arith.addf %627, %628 : f32
    %630 = arith.mulf %30, %611 : f32
    %631 = arith.addf %629, %630 : f32
    %632 = arith.mulf %6, %613 : f32
    %633 = arith.addf %631, %632 : f32
    %634 = arith.mulf %22, %586 : f32
    %cst_122 = arith.constant 0.000000e+00 : f32
    %635 = arith.addf %cst_122, %634 : f32
    %636 = arith.mulf %26, %594 : f32
    %637 = arith.addf %635, %636 : f32
    %638 = arith.mulf %34, %611 : f32
    %639 = arith.addf %637, %638 : f32
    %640 = arith.mulf %8, %613 : f32
    %641 = arith.addf %639, %640 : f32
    %642 = arith.mulf %9, %619 : f32
    %cst_123 = arith.constant 0.000000e+00 : f32
    %643 = arith.addf %cst_123, %642 : f32
    %644 = arith.mulf %10, %625 : f32
    %645 = arith.addf %643, %644 : f32
    %646 = arith.index_cast %608 : i32 to index
    %647 = memref.load %arg2[%646] : memref<50xf32, #tpu.memory_space<smem>>
    memref.store %645, %arg2[%646] : memref<50xf32, #tpu.memory_space<smem>>
    %648 = arith.mulf %9, %633 : f32
    %cst_124 = arith.constant 0.000000e+00 : f32
    %649 = arith.addf %cst_124, %648 : f32
    %650 = arith.mulf %10, %641 : f32
    %651 = arith.addf %649, %650 : f32
    %652 = arith.index_cast %609 : i32 to index
    %653 = memref.load %arg2[%652] : memref<50xf32, #tpu.memory_space<smem>>
    memref.store %651, %arg2[%652] : memref<50xf32, #tpu.memory_space<smem>>
    %c13_i32 = arith.constant 13 : i32
    %c2_i32_125 = arith.constant 2 : i32
    %654 = arith.muli %c2_i32_125, %c13_i32 : i32
    %c1_i32_126 = arith.constant 1 : i32
    %655 = arith.addi %c1_i32_126, %654 : i32
    %c1_i32_127 = arith.constant 1 : i32
    %656 = arith.addi %655, %c1_i32_127 : i32
    %657 = arith.index_cast %655 : i32 to index
    %658 = memref.load %arg0[%657] : memref<50xf32, #tpu.memory_space<smem>>
    %659 = arith.index_cast %656 : i32 to index
    %660 = memref.load %arg0[%659] : memref<50xf32, #tpu.memory_space<smem>>
    %661 = arith.mulf %1, %633 : f32
    %cst_128 = arith.constant 0.000000e+00 : f32
    %662 = arith.addf %cst_128, %661 : f32
    %663 = arith.mulf %2, %641 : f32
    %664 = arith.addf %662, %663 : f32
    %665 = arith.mulf %6, %658 : f32
    %666 = arith.addf %664, %665 : f32
    %667 = arith.mulf %3, %633 : f32
    %cst_129 = arith.constant 0.000000e+00 : f32
    %668 = arith.addf %cst_129, %667 : f32
    %669 = arith.mulf %4, %641 : f32
    %670 = arith.addf %668, %669 : f32
    %671 = arith.mulf %8, %658 : f32
    %672 = arith.addf %670, %671 : f32
    %673 = arith.mulf %14, %633 : f32
    %cst_130 = arith.constant 0.000000e+00 : f32
    %674 = arith.addf %cst_130, %673 : f32
    %675 = arith.mulf %18, %641 : f32
    %676 = arith.addf %674, %675 : f32
    %677 = arith.mulf %30, %658 : f32
    %678 = arith.addf %676, %677 : f32
    %679 = arith.mulf %6, %660 : f32
    %680 = arith.addf %678, %679 : f32
    %681 = arith.mulf %22, %633 : f32
    %cst_131 = arith.constant 0.000000e+00 : f32
    %682 = arith.addf %cst_131, %681 : f32
    %683 = arith.mulf %26, %641 : f32
    %684 = arith.addf %682, %683 : f32
    %685 = arith.mulf %34, %658 : f32
    %686 = arith.addf %684, %685 : f32
    %687 = arith.mulf %8, %660 : f32
    %688 = arith.addf %686, %687 : f32
    %689 = arith.mulf %9, %666 : f32
    %cst_132 = arith.constant 0.000000e+00 : f32
    %690 = arith.addf %cst_132, %689 : f32
    %691 = arith.mulf %10, %672 : f32
    %692 = arith.addf %690, %691 : f32
    %693 = arith.index_cast %655 : i32 to index
    %694 = memref.load %arg2[%693] : memref<50xf32, #tpu.memory_space<smem>>
    memref.store %692, %arg2[%693] : memref<50xf32, #tpu.memory_space<smem>>
    %695 = arith.mulf %9, %680 : f32
    %cst_133 = arith.constant 0.000000e+00 : f32
    %696 = arith.addf %cst_133, %695 : f32
    %697 = arith.mulf %10, %688 : f32
    %698 = arith.addf %696, %697 : f32
    %699 = arith.index_cast %656 : i32 to index
    %700 = memref.load %arg2[%699] : memref<50xf32, #tpu.memory_space<smem>>
    memref.store %698, %arg2[%699] : memref<50xf32, #tpu.memory_space<smem>>
    %c14_i32 = arith.constant 14 : i32
    %c2_i32_134 = arith.constant 2 : i32
    %701 = arith.muli %c2_i32_134, %c14_i32 : i32
    %c1_i32_135 = arith.constant 1 : i32
    %702 = arith.addi %c1_i32_135, %701 : i32
    %c1_i32_136 = arith.constant 1 : i32
    %703 = arith.addi %702, %c1_i32_136 : i32
    %704 = arith.index_cast %702 : i32 to index
    %705 = memref.load %arg0[%704] : memref<50xf32, #tpu.memory_space<smem>>
    %706 = arith.index_cast %703 : i32 to index
    %707 = memref.load %arg0[%706] : memref<50xf32, #tpu.memory_space<smem>>
    %708 = arith.mulf %1, %680 : f32
    %cst_137 = arith.constant 0.000000e+00 : f32
    %709 = arith.addf %cst_137, %708 : f32
    %710 = arith.mulf %2, %688 : f32
    %711 = arith.addf %709, %710 : f32
    %712 = arith.mulf %6, %705 : f32
    %713 = arith.addf %711, %712 : f32
    %714 = arith.mulf %3, %680 : f32
    %cst_138 = arith.constant 0.000000e+00 : f32
    %715 = arith.addf %cst_138, %714 : f32
    %716 = arith.mulf %4, %688 : f32
    %717 = arith.addf %715, %716 : f32
    %718 = arith.mulf %8, %705 : f32
    %719 = arith.addf %717, %718 : f32
    %720 = arith.mulf %14, %680 : f32
    %cst_139 = arith.constant 0.000000e+00 : f32
    %721 = arith.addf %cst_139, %720 : f32
    %722 = arith.mulf %18, %688 : f32
    %723 = arith.addf %721, %722 : f32
    %724 = arith.mulf %30, %705 : f32
    %725 = arith.addf %723, %724 : f32
    %726 = arith.mulf %6, %707 : f32
    %727 = arith.addf %725, %726 : f32
    %728 = arith.mulf %22, %680 : f32
    %cst_140 = arith.constant 0.000000e+00 : f32
    %729 = arith.addf %cst_140, %728 : f32
    %730 = arith.mulf %26, %688 : f32
    %731 = arith.addf %729, %730 : f32
    %732 = arith.mulf %34, %705 : f32
    %733 = arith.addf %731, %732 : f32
    %734 = arith.mulf %8, %707 : f32
    %735 = arith.addf %733, %734 : f32
    %736 = arith.mulf %9, %713 : f32
    %cst_141 = arith.constant 0.000000e+00 : f32
    %737 = arith.addf %cst_141, %736 : f32
    %738 = arith.mulf %10, %719 : f32
    %739 = arith.addf %737, %738 : f32
    %740 = arith.index_cast %702 : i32 to index
    %741 = memref.load %arg2[%740] : memref<50xf32, #tpu.memory_space<smem>>
    memref.store %739, %arg2[%740] : memref<50xf32, #tpu.memory_space<smem>>
    %742 = arith.mulf %9, %727 : f32
    %cst_142 = arith.constant 0.000000e+00 : f32
    %743 = arith.addf %cst_142, %742 : f32
    %744 = arith.mulf %10, %735 : f32
    %745 = arith.addf %743, %744 : f32
    %746 = arith.index_cast %703 : i32 to index
    %747 = memref.load %arg2[%746] : memref<50xf32, #tpu.memory_space<smem>>
    memref.store %745, %arg2[%746] : memref<50xf32, #tpu.memory_space<smem>>
    %c15_i32 = arith.constant 15 : i32
    %c2_i32_143 = arith.constant 2 : i32
    %748 = arith.muli %c2_i32_143, %c15_i32 : i32
    %c1_i32_144 = arith.constant 1 : i32
    %749 = arith.addi %c1_i32_144, %748 : i32
    %c1_i32_145 = arith.constant 1 : i32
    %750 = arith.addi %749, %c1_i32_145 : i32
    %751 = arith.index_cast %749 : i32 to index
    %752 = memref.load %arg0[%751] : memref<50xf32, #tpu.memory_space<smem>>
    %753 = arith.index_cast %750 : i32 to index
    %754 = memref.load %arg0[%753] : memref<50xf32, #tpu.memory_space<smem>>
    %755 = arith.mulf %1, %727 : f32
    %cst_146 = arith.constant 0.000000e+00 : f32
    %756 = arith.addf %cst_146, %755 : f32
    %757 = arith.mulf %2, %735 : f32
    %758 = arith.addf %756, %757 : f32
    %759 = arith.mulf %6, %752 : f32
    %760 = arith.addf %758, %759 : f32
    %761 = arith.mulf %3, %727 : f32
    %cst_147 = arith.constant 0.000000e+00 : f32
    %762 = arith.addf %cst_147, %761 : f32
    %763 = arith.mulf %4, %735 : f32
    %764 = arith.addf %762, %763 : f32
    %765 = arith.mulf %8, %752 : f32
    %766 = arith.addf %764, %765 : f32
    %767 = arith.mulf %14, %727 : f32
    %cst_148 = arith.constant 0.000000e+00 : f32
    %768 = arith.addf %cst_148, %767 : f32
    %769 = arith.mulf %18, %735 : f32
    %770 = arith.addf %768, %769 : f32
    %771 = arith.mulf %30, %752 : f32
    %772 = arith.addf %770, %771 : f32
    %773 = arith.mulf %6, %754 : f32
    %774 = arith.addf %772, %773 : f32
    %775 = arith.mulf %22, %727 : f32
    %cst_149 = arith.constant 0.000000e+00 : f32
    %776 = arith.addf %cst_149, %775 : f32
    %777 = arith.mulf %26, %735 : f32
    %778 = arith.addf %776, %777 : f32
    %779 = arith.mulf %34, %752 : f32
    %780 = arith.addf %778, %779 : f32
    %781 = arith.mulf %8, %754 : f32
    %782 = arith.addf %780, %781 : f32
    %783 = arith.mulf %9, %760 : f32
    %cst_150 = arith.constant 0.000000e+00 : f32
    %784 = arith.addf %cst_150, %783 : f32
    %785 = arith.mulf %10, %766 : f32
    %786 = arith.addf %784, %785 : f32
    %787 = arith.index_cast %749 : i32 to index
    %788 = memref.load %arg2[%787] : memref<50xf32, #tpu.memory_space<smem>>
    memref.store %786, %arg2[%787] : memref<50xf32, #tpu.memory_space<smem>>
    %789 = arith.mulf %9, %774 : f32
    %cst_151 = arith.constant 0.000000e+00 : f32
    %790 = arith.addf %cst_151, %789 : f32
    %791 = arith.mulf %10, %782 : f32
    %792 = arith.addf %790, %791 : f32
    %793 = arith.index_cast %750 : i32 to index
    %794 = memref.load %arg2[%793] : memref<50xf32, #tpu.memory_space<smem>>
    memref.store %792, %arg2[%793] : memref<50xf32, #tpu.memory_space<smem>>
    %c16_i32 = arith.constant 16 : i32
    %c2_i32_152 = arith.constant 2 : i32
    %795 = arith.muli %c2_i32_152, %c16_i32 : i32
    %c1_i32_153 = arith.constant 1 : i32
    %796 = arith.addi %c1_i32_153, %795 : i32
    %c1_i32_154 = arith.constant 1 : i32
    %797 = arith.addi %796, %c1_i32_154 : i32
    %798 = arith.index_cast %796 : i32 to index
    %799 = memref.load %arg0[%798] : memref<50xf32, #tpu.memory_space<smem>>
    %800 = arith.index_cast %797 : i32 to index
    %801 = memref.load %arg0[%800] : memref<50xf32, #tpu.memory_space<smem>>
    %802 = arith.mulf %1, %774 : f32
    %cst_155 = arith.constant 0.000000e+00 : f32
    %803 = arith.addf %cst_155, %802 : f32
    %804 = arith.mulf %2, %782 : f32
    %805 = arith.addf %803, %804 : f32
    %806 = arith.mulf %6, %799 : f32
    %807 = arith.addf %805, %806 : f32
    %808 = arith.mulf %3, %774 : f32
    %cst_156 = arith.constant 0.000000e+00 : f32
    %809 = arith.addf %cst_156, %808 : f32
    %810 = arith.mulf %4, %782 : f32
    %811 = arith.addf %809, %810 : f32
    %812 = arith.mulf %8, %799 : f32
    %813 = arith.addf %811, %812 : f32
    %814 = arith.mulf %14, %774 : f32
    %cst_157 = arith.constant 0.000000e+00 : f32
    %815 = arith.addf %cst_157, %814 : f32
    %816 = arith.mulf %18, %782 : f32
    %817 = arith.addf %815, %816 : f32
    %818 = arith.mulf %30, %799 : f32
    %819 = arith.addf %817, %818 : f32
    %820 = arith.mulf %6, %801 : f32
    %821 = arith.addf %819, %820 : f32
    %822 = arith.mulf %22, %774 : f32
    %cst_158 = arith.constant 0.000000e+00 : f32
    %823 = arith.addf %cst_158, %822 : f32
    %824 = arith.mulf %26, %782 : f32
    %825 = arith.addf %823, %824 : f32
    %826 = arith.mulf %34, %799 : f32
    %827 = arith.addf %825, %826 : f32
    %828 = arith.mulf %8, %801 : f32
    %829 = arith.addf %827, %828 : f32
    %830 = arith.mulf %9, %807 : f32
    %cst_159 = arith.constant 0.000000e+00 : f32
    %831 = arith.addf %cst_159, %830 : f32
    %832 = arith.mulf %10, %813 : f32
    %833 = arith.addf %831, %832 : f32
    %834 = arith.index_cast %796 : i32 to index
    %835 = memref.load %arg2[%834] : memref<50xf32, #tpu.memory_space<smem>>
    memref.store %833, %arg2[%834] : memref<50xf32, #tpu.memory_space<smem>>
    %836 = arith.mulf %9, %821 : f32
    %cst_160 = arith.constant 0.000000e+00 : f32
    %837 = arith.addf %cst_160, %836 : f32
    %838 = arith.mulf %10, %829 : f32
    %839 = arith.addf %837, %838 : f32
    %840 = arith.index_cast %797 : i32 to index
    %841 = memref.load %arg2[%840] : memref<50xf32, #tpu.memory_space<smem>>
    memref.store %839, %arg2[%840] : memref<50xf32, #tpu.memory_space<smem>>
    %c17_i32 = arith.constant 17 : i32
    %c2_i32_161 = arith.constant 2 : i32
    %842 = arith.muli %c2_i32_161, %c17_i32 : i32
    %c1_i32_162 = arith.constant 1 : i32
    %843 = arith.addi %c1_i32_162, %842 : i32
    %c1_i32_163 = arith.constant 1 : i32
    %844 = arith.addi %843, %c1_i32_163 : i32
    %845 = arith.index_cast %843 : i32 to index
    %846 = memref.load %arg0[%845] : memref<50xf32, #tpu.memory_space<smem>>
    %847 = arith.index_cast %844 : i32 to index
    %848 = memref.load %arg0[%847] : memref<50xf32, #tpu.memory_space<smem>>
    %849 = arith.mulf %1, %821 : f32
    %cst_164 = arith.constant 0.000000e+00 : f32
    %850 = arith.addf %cst_164, %849 : f32
    %851 = arith.mulf %2, %829 : f32
    %852 = arith.addf %850, %851 : f32
    %853 = arith.mulf %6, %846 : f32
    %854 = arith.addf %852, %853 : f32
    %855 = arith.mulf %3, %821 : f32
    %cst_165 = arith.constant 0.000000e+00 : f32
    %856 = arith.addf %cst_165, %855 : f32
    %857 = arith.mulf %4, %829 : f32
    %858 = arith.addf %856, %857 : f32
    %859 = arith.mulf %8, %846 : f32
    %860 = arith.addf %858, %859 : f32
    %861 = arith.mulf %14, %821 : f32
    %cst_166 = arith.constant 0.000000e+00 : f32
    %862 = arith.addf %cst_166, %861 : f32
    %863 = arith.mulf %18, %829 : f32
    %864 = arith.addf %862, %863 : f32
    %865 = arith.mulf %30, %846 : f32
    %866 = arith.addf %864, %865 : f32
    %867 = arith.mulf %6, %848 : f32
    %868 = arith.addf %866, %867 : f32
    %869 = arith.mulf %22, %821 : f32
    %cst_167 = arith.constant 0.000000e+00 : f32
    %870 = arith.addf %cst_167, %869 : f32
    %871 = arith.mulf %26, %829 : f32
    %872 = arith.addf %870, %871 : f32
    %873 = arith.mulf %34, %846 : f32
    %874 = arith.addf %872, %873 : f32
    %875 = arith.mulf %8, %848 : f32
    %876 = arith.addf %874, %875 : f32
    %877 = arith.mulf %9, %854 : f32
    %cst_168 = arith.constant 0.000000e+00 : f32
    %878 = arith.addf %cst_168, %877 : f32
    %879 = arith.mulf %10, %860 : f32
    %880 = arith.addf %878, %879 : f32
    %881 = arith.index_cast %843 : i32 to index
    %882 = memref.load %arg2[%881] : memref<50xf32, #tpu.memory_space<smem>>
    memref.store %880, %arg2[%881] : memref<50xf32, #tpu.memory_space<smem>>
    %883 = arith.mulf %9, %868 : f32
    %cst_169 = arith.constant 0.000000e+00 : f32
    %884 = arith.addf %cst_169, %883 : f32
    %885 = arith.mulf %10, %876 : f32
    %886 = arith.addf %884, %885 : f32
    %887 = arith.index_cast %844 : i32 to index
    %888 = memref.load %arg2[%887] : memref<50xf32, #tpu.memory_space<smem>>
    memref.store %886, %arg2[%887] : memref<50xf32, #tpu.memory_space<smem>>
    %c18_i32 = arith.constant 18 : i32
    %c2_i32_170 = arith.constant 2 : i32
    %889 = arith.muli %c2_i32_170, %c18_i32 : i32
    %c1_i32_171 = arith.constant 1 : i32
    %890 = arith.addi %c1_i32_171, %889 : i32
    %c1_i32_172 = arith.constant 1 : i32
    %891 = arith.addi %890, %c1_i32_172 : i32
    %892 = arith.index_cast %890 : i32 to index
    %893 = memref.load %arg0[%892] : memref<50xf32, #tpu.memory_space<smem>>
    %894 = arith.index_cast %891 : i32 to index
    %895 = memref.load %arg0[%894] : memref<50xf32, #tpu.memory_space<smem>>
    %896 = arith.mulf %1, %868 : f32
    %cst_173 = arith.constant 0.000000e+00 : f32
    %897 = arith.addf %cst_173, %896 : f32
    %898 = arith.mulf %2, %876 : f32
    %899 = arith.addf %897, %898 : f32
    %900 = arith.mulf %6, %893 : f32
    %901 = arith.addf %899, %900 : f32
    %902 = arith.mulf %3, %868 : f32
    %cst_174 = arith.constant 0.000000e+00 : f32
    %903 = arith.addf %cst_174, %902 : f32
    %904 = arith.mulf %4, %876 : f32
    %905 = arith.addf %903, %904 : f32
    %906 = arith.mulf %8, %893 : f32
    %907 = arith.addf %905, %906 : f32
    %908 = arith.mulf %14, %868 : f32
    %cst_175 = arith.constant 0.000000e+00 : f32
    %909 = arith.addf %cst_175, %908 : f32
    %910 = arith.mulf %18, %876 : f32
    %911 = arith.addf %909, %910 : f32
    %912 = arith.mulf %30, %893 : f32
    %913 = arith.addf %911, %912 : f32
    %914 = arith.mulf %6, %895 : f32
    %915 = arith.addf %913, %914 : f32
    %916 = arith.mulf %22, %868 : f32
    %cst_176 = arith.constant 0.000000e+00 : f32
    %917 = arith.addf %cst_176, %916 : f32
    %918 = arith.mulf %26, %876 : f32
    %919 = arith.addf %917, %918 : f32
    %920 = arith.mulf %34, %893 : f32
    %921 = arith.addf %919, %920 : f32
    %922 = arith.mulf %8, %895 : f32
    %923 = arith.addf %921, %922 : f32
    %924 = arith.mulf %9, %901 : f32
    %cst_177 = arith.constant 0.000000e+00 : f32
    %925 = arith.addf %cst_177, %924 : f32
    %926 = arith.mulf %10, %907 : f32
    %927 = arith.addf %925, %926 : f32
    %928 = arith.index_cast %890 : i32 to index
    %929 = memref.load %arg2[%928] : memref<50xf32, #tpu.memory_space<smem>>
    memref.store %927, %arg2[%928] : memref<50xf32, #tpu.memory_space<smem>>
    %930 = arith.mulf %9, %915 : f32
    %cst_178 = arith.constant 0.000000e+00 : f32
    %931 = arith.addf %cst_178, %930 : f32
    %932 = arith.mulf %10, %923 : f32
    %933 = arith.addf %931, %932 : f32
    %934 = arith.index_cast %891 : i32 to index
    %935 = memref.load %arg2[%934] : memref<50xf32, #tpu.memory_space<smem>>
    memref.store %933, %arg2[%934] : memref<50xf32, #tpu.memory_space<smem>>
    %c19_i32 = arith.constant 19 : i32
    %c2_i32_179 = arith.constant 2 : i32
    %936 = arith.muli %c2_i32_179, %c19_i32 : i32
    %c1_i32_180 = arith.constant 1 : i32
    %937 = arith.addi %c1_i32_180, %936 : i32
    %c1_i32_181 = arith.constant 1 : i32
    %938 = arith.addi %937, %c1_i32_181 : i32
    %939 = arith.index_cast %937 : i32 to index
    %940 = memref.load %arg0[%939] : memref<50xf32, #tpu.memory_space<smem>>
    %941 = arith.index_cast %938 : i32 to index
    %942 = memref.load %arg0[%941] : memref<50xf32, #tpu.memory_space<smem>>
    %943 = arith.mulf %1, %915 : f32
    %cst_182 = arith.constant 0.000000e+00 : f32
    %944 = arith.addf %cst_182, %943 : f32
    %945 = arith.mulf %2, %923 : f32
    %946 = arith.addf %944, %945 : f32
    %947 = arith.mulf %6, %940 : f32
    %948 = arith.addf %946, %947 : f32
    %949 = arith.mulf %3, %915 : f32
    %cst_183 = arith.constant 0.000000e+00 : f32
    %950 = arith.addf %cst_183, %949 : f32
    %951 = arith.mulf %4, %923 : f32
    %952 = arith.addf %950, %951 : f32
    %953 = arith.mulf %8, %940 : f32
    %954 = arith.addf %952, %953 : f32
    %955 = arith.mulf %14, %915 : f32
    %cst_184 = arith.constant 0.000000e+00 : f32
    %956 = arith.addf %cst_184, %955 : f32
    %957 = arith.mulf %18, %923 : f32
    %958 = arith.addf %956, %957 : f32
    %959 = arith.mulf %30, %940 : f32
    %960 = arith.addf %958, %959 : f32
    %961 = arith.mulf %6, %942 : f32
    %962 = arith.addf %960, %961 : f32
    %963 = arith.mulf %22, %915 : f32
    %cst_185 = arith.constant 0.000000e+00 : f32
    %964 = arith.addf %cst_185, %963 : f32
    %965 = arith.mulf %26, %923 : f32
    %966 = arith.addf %964, %965 : f32
    %967 = arith.mulf %34, %940 : f32
    %968 = arith.addf %966, %967 : f32
    %969 = arith.mulf %8, %942 : f32
    %970 = arith.addf %968, %969 : f32
    %971 = arith.mulf %9, %948 : f32
    %cst_186 = arith.constant 0.000000e+00 : f32
    %972 = arith.addf %cst_186, %971 : f32
    %973 = arith.mulf %10, %954 : f32
    %974 = arith.addf %972, %973 : f32
    %975 = arith.index_cast %937 : i32 to index
    %976 = memref.load %arg2[%975] : memref<50xf32, #tpu.memory_space<smem>>
    memref.store %974, %arg2[%975] : memref<50xf32, #tpu.memory_space<smem>>
    %977 = arith.mulf %9, %962 : f32
    %cst_187 = arith.constant 0.000000e+00 : f32
    %978 = arith.addf %cst_187, %977 : f32
    %979 = arith.mulf %10, %970 : f32
    %980 = arith.addf %978, %979 : f32
    %981 = arith.index_cast %938 : i32 to index
    %982 = memref.load %arg2[%981] : memref<50xf32, #tpu.memory_space<smem>>
    memref.store %980, %arg2[%981] : memref<50xf32, #tpu.memory_space<smem>>
    %c20_i32 = arith.constant 20 : i32
    %c2_i32_188 = arith.constant 2 : i32
    %983 = arith.muli %c2_i32_188, %c20_i32 : i32
    %c1_i32_189 = arith.constant 1 : i32
    %984 = arith.addi %c1_i32_189, %983 : i32
    %c1_i32_190 = arith.constant 1 : i32
    %985 = arith.addi %984, %c1_i32_190 : i32
    %986 = arith.index_cast %984 : i32 to index
    %987 = memref.load %arg0[%986] : memref<50xf32, #tpu.memory_space<smem>>
    %988 = arith.index_cast %985 : i32 to index
    %989 = memref.load %arg0[%988] : memref<50xf32, #tpu.memory_space<smem>>
    %990 = arith.mulf %1, %962 : f32
    %cst_191 = arith.constant 0.000000e+00 : f32
    %991 = arith.addf %cst_191, %990 : f32
    %992 = arith.mulf %2, %970 : f32
    %993 = arith.addf %991, %992 : f32
    %994 = arith.mulf %6, %987 : f32
    %995 = arith.addf %993, %994 : f32
    %996 = arith.mulf %3, %962 : f32
    %cst_192 = arith.constant 0.000000e+00 : f32
    %997 = arith.addf %cst_192, %996 : f32
    %998 = arith.mulf %4, %970 : f32
    %999 = arith.addf %997, %998 : f32
    %1000 = arith.mulf %8, %987 : f32
    %1001 = arith.addf %999, %1000 : f32
    %1002 = arith.mulf %14, %962 : f32
    %cst_193 = arith.constant 0.000000e+00 : f32
    %1003 = arith.addf %cst_193, %1002 : f32
    %1004 = arith.mulf %18, %970 : f32
    %1005 = arith.addf %1003, %1004 : f32
    %1006 = arith.mulf %30, %987 : f32
    %1007 = arith.addf %1005, %1006 : f32
    %1008 = arith.mulf %6, %989 : f32
    %1009 = arith.addf %1007, %1008 : f32
    %1010 = arith.mulf %22, %962 : f32
    %cst_194 = arith.constant 0.000000e+00 : f32
    %1011 = arith.addf %cst_194, %1010 : f32
    %1012 = arith.mulf %26, %970 : f32
    %1013 = arith.addf %1011, %1012 : f32
    %1014 = arith.mulf %34, %987 : f32
    %1015 = arith.addf %1013, %1014 : f32
    %1016 = arith.mulf %8, %989 : f32
    %1017 = arith.addf %1015, %1016 : f32
    %1018 = arith.mulf %9, %995 : f32
    %cst_195 = arith.constant 0.000000e+00 : f32
    %1019 = arith.addf %cst_195, %1018 : f32
    %1020 = arith.mulf %10, %1001 : f32
    %1021 = arith.addf %1019, %1020 : f32
    %1022 = arith.index_cast %984 : i32 to index
    %1023 = memref.load %arg2[%1022] : memref<50xf32, #tpu.memory_space<smem>>
    memref.store %1021, %arg2[%1022] : memref<50xf32, #tpu.memory_space<smem>>
    %1024 = arith.mulf %9, %1009 : f32
    %cst_196 = arith.constant 0.000000e+00 : f32
    %1025 = arith.addf %cst_196, %1024 : f32
    %1026 = arith.mulf %10, %1017 : f32
    %1027 = arith.addf %1025, %1026 : f32
    %1028 = arith.index_cast %985 : i32 to index
    %1029 = memref.load %arg2[%1028] : memref<50xf32, #tpu.memory_space<smem>>
    memref.store %1027, %arg2[%1028] : memref<50xf32, #tpu.memory_space<smem>>
    %c21_i32 = arith.constant 21 : i32
    %c2_i32_197 = arith.constant 2 : i32
    %1030 = arith.muli %c2_i32_197, %c21_i32 : i32
    %c1_i32_198 = arith.constant 1 : i32
    %1031 = arith.addi %c1_i32_198, %1030 : i32
    %c1_i32_199 = arith.constant 1 : i32
    %1032 = arith.addi %1031, %c1_i32_199 : i32
    %1033 = arith.index_cast %1031 : i32 to index
    %1034 = memref.load %arg0[%1033] : memref<50xf32, #tpu.memory_space<smem>>
    %1035 = arith.index_cast %1032 : i32 to index
    %1036 = memref.load %arg0[%1035] : memref<50xf32, #tpu.memory_space<smem>>
    %1037 = arith.mulf %1, %1009 : f32
    %cst_200 = arith.constant 0.000000e+00 : f32
    %1038 = arith.addf %cst_200, %1037 : f32
    %1039 = arith.mulf %2, %1017 : f32
    %1040 = arith.addf %1038, %1039 : f32
    %1041 = arith.mulf %6, %1034 : f32
    %1042 = arith.addf %1040, %1041 : f32
    %1043 = arith.mulf %3, %1009 : f32
    %cst_201 = arith.constant 0.000000e+00 : f32
    %1044 = arith.addf %cst_201, %1043 : f32
    %1045 = arith.mulf %4, %1017 : f32
    %1046 = arith.addf %1044, %1045 : f32
    %1047 = arith.mulf %8, %1034 : f32
    %1048 = arith.addf %1046, %1047 : f32
    %1049 = arith.mulf %14, %1009 : f32
    %cst_202 = arith.constant 0.000000e+00 : f32
    %1050 = arith.addf %cst_202, %1049 : f32
    %1051 = arith.mulf %18, %1017 : f32
    %1052 = arith.addf %1050, %1051 : f32
    %1053 = arith.mulf %30, %1034 : f32
    %1054 = arith.addf %1052, %1053 : f32
    %1055 = arith.mulf %6, %1036 : f32
    %1056 = arith.addf %1054, %1055 : f32
    %1057 = arith.mulf %22, %1009 : f32
    %cst_203 = arith.constant 0.000000e+00 : f32
    %1058 = arith.addf %cst_203, %1057 : f32
    %1059 = arith.mulf %26, %1017 : f32
    %1060 = arith.addf %1058, %1059 : f32
    %1061 = arith.mulf %34, %1034 : f32
    %1062 = arith.addf %1060, %1061 : f32
    %1063 = arith.mulf %8, %1036 : f32
    %1064 = arith.addf %1062, %1063 : f32
    %1065 = arith.mulf %9, %1042 : f32
    %cst_204 = arith.constant 0.000000e+00 : f32
    %1066 = arith.addf %cst_204, %1065 : f32
    %1067 = arith.mulf %10, %1048 : f32
    %1068 = arith.addf %1066, %1067 : f32
    %1069 = arith.index_cast %1031 : i32 to index
    %1070 = memref.load %arg2[%1069] : memref<50xf32, #tpu.memory_space<smem>>
    memref.store %1068, %arg2[%1069] : memref<50xf32, #tpu.memory_space<smem>>
    %1071 = arith.mulf %9, %1056 : f32
    %cst_205 = arith.constant 0.000000e+00 : f32
    %1072 = arith.addf %cst_205, %1071 : f32
    %1073 = arith.mulf %10, %1064 : f32
    %1074 = arith.addf %1072, %1073 : f32
    %1075 = arith.index_cast %1032 : i32 to index
    %1076 = memref.load %arg2[%1075] : memref<50xf32, #tpu.memory_space<smem>>
    memref.store %1074, %arg2[%1075] : memref<50xf32, #tpu.memory_space<smem>>
    %c22_i32 = arith.constant 22 : i32
    %c2_i32_206 = arith.constant 2 : i32
    %1077 = arith.muli %c2_i32_206, %c22_i32 : i32
    %c1_i32_207 = arith.constant 1 : i32
    %1078 = arith.addi %c1_i32_207, %1077 : i32
    %c1_i32_208 = arith.constant 1 : i32
    %1079 = arith.addi %1078, %c1_i32_208 : i32
    %1080 = arith.index_cast %1078 : i32 to index
    %1081 = memref.load %arg0[%1080] : memref<50xf32, #tpu.memory_space<smem>>
    %1082 = arith.index_cast %1079 : i32 to index
    %1083 = memref.load %arg0[%1082] : memref<50xf32, #tpu.memory_space<smem>>
    %1084 = arith.mulf %1, %1056 : f32
    %cst_209 = arith.constant 0.000000e+00 : f32
    %1085 = arith.addf %cst_209, %1084 : f32
    %1086 = arith.mulf %2, %1064 : f32
    %1087 = arith.addf %1085, %1086 : f32
    %1088 = arith.mulf %6, %1081 : f32
    %1089 = arith.addf %1087, %1088 : f32
    %1090 = arith.mulf %3, %1056 : f32
    %cst_210 = arith.constant 0.000000e+00 : f32
    %1091 = arith.addf %cst_210, %1090 : f32
    %1092 = arith.mulf %4, %1064 : f32
    %1093 = arith.addf %1091, %1092 : f32
    %1094 = arith.mulf %8, %1081 : f32
    %1095 = arith.addf %1093, %1094 : f32
    %1096 = arith.mulf %14, %1056 : f32
    %cst_211 = arith.constant 0.000000e+00 : f32
    %1097 = arith.addf %cst_211, %1096 : f32
    %1098 = arith.mulf %18, %1064 : f32
    %1099 = arith.addf %1097, %1098 : f32
    %1100 = arith.mulf %30, %1081 : f32
    %1101 = arith.addf %1099, %1100 : f32
    %1102 = arith.mulf %6, %1083 : f32
    %1103 = arith.addf %1101, %1102 : f32
    %1104 = arith.mulf %22, %1056 : f32
    %cst_212 = arith.constant 0.000000e+00 : f32
    %1105 = arith.addf %cst_212, %1104 : f32
    %1106 = arith.mulf %26, %1064 : f32
    %1107 = arith.addf %1105, %1106 : f32
    %1108 = arith.mulf %34, %1081 : f32
    %1109 = arith.addf %1107, %1108 : f32
    %1110 = arith.mulf %8, %1083 : f32
    %1111 = arith.addf %1109, %1110 : f32
    %1112 = arith.mulf %9, %1089 : f32
    %cst_213 = arith.constant 0.000000e+00 : f32
    %1113 = arith.addf %cst_213, %1112 : f32
    %1114 = arith.mulf %10, %1095 : f32
    %1115 = arith.addf %1113, %1114 : f32
    %1116 = arith.index_cast %1078 : i32 to index
    %1117 = memref.load %arg2[%1116] : memref<50xf32, #tpu.memory_space<smem>>
    memref.store %1115, %arg2[%1116] : memref<50xf32, #tpu.memory_space<smem>>
    %1118 = arith.mulf %9, %1103 : f32
    %cst_214 = arith.constant 0.000000e+00 : f32
    %1119 = arith.addf %cst_214, %1118 : f32
    %1120 = arith.mulf %10, %1111 : f32
    %1121 = arith.addf %1119, %1120 : f32
    %1122 = arith.index_cast %1079 : i32 to index
    %1123 = memref.load %arg2[%1122] : memref<50xf32, #tpu.memory_space<smem>>
    memref.store %1121, %arg2[%1122] : memref<50xf32, #tpu.memory_space<smem>>
    %c23_i32 = arith.constant 23 : i32
    %c2_i32_215 = arith.constant 2 : i32
    %1124 = arith.muli %c2_i32_215, %c23_i32 : i32
    %c1_i32_216 = arith.constant 1 : i32
    %1125 = arith.addi %c1_i32_216, %1124 : i32
    %c1_i32_217 = arith.constant 1 : i32
    %1126 = arith.addi %1125, %c1_i32_217 : i32
    %1127 = arith.index_cast %1125 : i32 to index
    %1128 = memref.load %arg0[%1127] : memref<50xf32, #tpu.memory_space<smem>>
    %1129 = arith.index_cast %1126 : i32 to index
    %1130 = memref.load %arg0[%1129] : memref<50xf32, #tpu.memory_space<smem>>
    %1131 = arith.mulf %1, %1103 : f32
    %cst_218 = arith.constant 0.000000e+00 : f32
    %1132 = arith.addf %cst_218, %1131 : f32
    %1133 = arith.mulf %2, %1111 : f32
    %1134 = arith.addf %1132, %1133 : f32
    %1135 = arith.mulf %6, %1128 : f32
    %1136 = arith.addf %1134, %1135 : f32
    %1137 = arith.mulf %3, %1103 : f32
    %cst_219 = arith.constant 0.000000e+00 : f32
    %1138 = arith.addf %cst_219, %1137 : f32
    %1139 = arith.mulf %4, %1111 : f32
    %1140 = arith.addf %1138, %1139 : f32
    %1141 = arith.mulf %8, %1128 : f32
    %1142 = arith.addf %1140, %1141 : f32
    %1143 = arith.mulf %14, %1103 : f32
    %cst_220 = arith.constant 0.000000e+00 : f32
    %1144 = arith.addf %cst_220, %1143 : f32
    %1145 = arith.mulf %18, %1111 : f32
    %1146 = arith.addf %1144, %1145 : f32
    %1147 = arith.mulf %30, %1128 : f32
    %1148 = arith.addf %1146, %1147 : f32
    %1149 = arith.mulf %6, %1130 : f32
    %1150 = arith.addf %1148, %1149 : f32
    %1151 = arith.mulf %22, %1103 : f32
    %cst_221 = arith.constant 0.000000e+00 : f32
    %1152 = arith.addf %cst_221, %1151 : f32
    %1153 = arith.mulf %26, %1111 : f32
    %1154 = arith.addf %1152, %1153 : f32
    %1155 = arith.mulf %34, %1128 : f32
    %1156 = arith.addf %1154, %1155 : f32
    %1157 = arith.mulf %8, %1130 : f32
    %1158 = arith.addf %1156, %1157 : f32
    %1159 = arith.mulf %9, %1136 : f32
    %cst_222 = arith.constant 0.000000e+00 : f32
    %1160 = arith.addf %cst_222, %1159 : f32
    %1161 = arith.mulf %10, %1142 : f32
    %1162 = arith.addf %1160, %1161 : f32
    %1163 = arith.index_cast %1125 : i32 to index
    %1164 = memref.load %arg2[%1163] : memref<50xf32, #tpu.memory_space<smem>>
    memref.store %1162, %arg2[%1163] : memref<50xf32, #tpu.memory_space<smem>>
    %1165 = arith.mulf %9, %1150 : f32
    %cst_223 = arith.constant 0.000000e+00 : f32
    %1166 = arith.addf %cst_223, %1165 : f32
    %1167 = arith.mulf %10, %1158 : f32
    %1168 = arith.addf %1166, %1167 : f32
    %1169 = arith.index_cast %1126 : i32 to index
    %1170 = memref.load %arg2[%1169] : memref<50xf32, #tpu.memory_space<smem>>
    memref.store %1168, %arg2[%1169] : memref<50xf32, #tpu.memory_space<smem>>
    %c24_i32 = arith.constant 24 : i32
    %c49 = arith.constant 49 : index
    %1171 = memref.load %arg0[%c49] : memref<50xf32, #tpu.memory_space<smem>>
    %1172 = arith.mulf %1, %1150 : f32
    %cst_224 = arith.constant 0.000000e+00 : f32
    %1173 = arith.addf %cst_224, %1172 : f32
    %1174 = arith.mulf %2, %1158 : f32
    %1175 = arith.addf %1173, %1174 : f32
    %1176 = arith.mulf %6, %1171 : f32
    %1177 = arith.addf %1175, %1176 : f32
    %1178 = arith.mulf %3, %1150 : f32
    %cst_225 = arith.constant 0.000000e+00 : f32
    %1179 = arith.addf %cst_225, %1178 : f32
    %1180 = arith.mulf %4, %1158 : f32
    %1181 = arith.addf %1179, %1180 : f32
    %1182 = arith.mulf %8, %1171 : f32
    %1183 = arith.addf %1181, %1182 : f32
    %1184 = arith.mulf %9, %1177 : f32
    %cst_226 = arith.constant 0.000000e+00 : f32
    %1185 = arith.addf %cst_226, %1184 : f32
    %1186 = arith.mulf %10, %1183 : f32
    %1187 = arith.addf %1185, %1186 : f32
    %c49_227 = arith.constant 49 : index
    %1188 = memref.load %arg2[%c49_227] : memref<50xf32, #tpu.memory_space<smem>>
    memref.store %1187, %arg2[%c49_227] : memref<50xf32, #tpu.memory_space<smem>>
    return
  }
}

</mosaic_0001>

<llo_original>
// kernel: tpu_custom_call.1
$region0: #{tpu_custom_call.1}
  #allocation0 [shape = 'u32[]', space=smem, size = 0x4, offset = 0x4, fixed_abs, tag = 'smem constant byte address 0x4 - core index']
  #allocation1 [shape = 'u32[144,128]{1,0:T(1,128)}', space=vmem, size = 0x12000, scoped, tag = 'internal scratch']
  %s0 = inlined_call_operand.hbm [shape: f32[50], index: 0, kind: input, shape index: {}]
  %s1 = inlined_call_operand.vmem [shape: f32[9], index: 1, kind: input, shape index: {}]
  %s2 = inlined_call_operand.hbm [shape: f32[50], index: 2, kind: output, shape index: {}]
  %s3 = sld [smem:[#allocation0]]
  $region26: #{tpu_custom_call.1} parent=0
    _
  %s5 = ssub.s32 1, %s3
  %s6 = scalar_select 0, %s5, %s3
  $region1: #{tpu_custom_call.1} parent=0
    #allocation2 [shape = 'u8[512]{0}', space=smem, size = 0x200, scoped, tag = 'input window, operand 0, single buffered']
    #allocation3 [shape = 's32[1]{0}', space=sflag, size = 0x4, scoped, tag = 'scoped memory for tpu_custom_call.1']
    #allocation4 [shape = 's32[1]{0}', space=sflag, size = 0x4, scoped, tag = 'scoped memory for tpu_custom_call.1']
    #allocation5 [shape = 's32[1]{0}', space=sflag, size = 0x4, scoped, tag = 'scoped memory for tpu_custom_call.1']
    #allocation6 [shape = 'u8[512]{0}', space=smem, size = 0x200, scoped, tag = 'input window, operand 1, single buffered']
    #allocation7 [shape = 'u8[512]{0}', space=smem, size = 0x200, scoped, tag = 'output window, operand 0, single buffered']
    %7 = vsyncpa [#allocation3], 0
    %8 = vsyncpa [#allocation5], 0
    %9 = vsyncpa [#allocation4], 0
    // Predicated region
    $region2: #{tpu_custom_call.1} parent=1 // pred_check
      _
    $region3: #{tpu_custom_call.1} parent=1 // pred_check_branch
      %11 = sbr.rel (0) target = $region5
    $region4: #{tpu_custom_call.1} parent=1 // pred_region
      %s13 = ssub.s32 16, 16
      %14 = vsyncadd [#allocation3], %s13
      %17 = dma.hbm_to_smem %s0, 16, [#allocation2], [#allocation3]
    $region5: #{tpu_custom_call.1} parent=1 // pred_fallthru
      _
    // Predicated region
    $region6: #{tpu_custom_call.1} parent=1 // pred_check
      _
    $region7: #{tpu_custom_call.1} parent=1 // pred_check_branch
      %19 = sbr.rel (0) target = $region9
    $region8: #{tpu_custom_call.1} parent=1 // pred_region
      %s21 = ssub.s32 16, 16
      %22 = vsyncadd [#allocation5], %s21
      %s24 = sshll.u32 %s1, 4
      %s25 = int_to_ptr.vmem [resolvable:$true] %s24
      %27 = dma.vmem_to_smem %s25, 16, [#allocation6], [#allocation5]
    $region9: #{tpu_custom_call.1} parent=1 // pred_fallthru
      _
    // Predicated region
    $region10: #{tpu_custom_call.1} parent=1 // pred_check
      _
    $region11: #{tpu_custom_call.1} parent=1 // pred_check_branch
      %29 = sbr.rel (0) target = $region13
    $region12: #{tpu_custom_call.1} parent=1 // pred_region
      %30 = dma.done [#allocation3], 16
    $region13: #{tpu_custom_call.1} parent=1 // pred_fallthru
      _
    // Predicated region
    $region14: #{tpu_custom_call.1} parent=1 // pred_check
      _
    $region15: #{tpu_custom_call.1} parent=1 // pred_check_branch
      %32 = sbr.rel (0) target = $region17
    $region16: #{tpu_custom_call.1} parent=1 // pred_region
      %33 = dma.done [#allocation5], 16
    $region17: #{tpu_custom_call.1} parent=1 // pred_fallthru
      _
    %34 = sfence
    %s35 = sld [smem:[#allocation6 + $0x8]]
    %s36 = sld [smem:[#allocation6]]
    %s37 = sld [smem:[#allocation6 + $0x1]]
    %s38 = sld [smem:[#allocation6 + $0x2]]
    %s39 = sld [smem:[#allocation6 + $0x3]]
    %s40 = sld [smem:[#allocation6 + $0x4]]
    %s41 = smul.f32 %s35, %s40
    %s42 = sld [smem:[#allocation6 + $0x5]]
    %s43 = smul.f32 %s35, %s42
    %s44 = sld [smem:[#allocation6 + $0x6]]
    %s45 = sld [smem:[#allocation6 + $0x7]]
    %s46 = smul.f32 %s36, %s36
    %s47 = sadd.f32 %s46, 0.0
    %s48 = smul.f32 %s37, %s38
    %s49 = sadd.f32 %s47, %s48
    %s50 = smul.f32 %s36, %s37
    %s51 = sadd.f32 %s50, 0.0
    %s52 = smul.f32 %s37, %s39
    %s53 = sadd.f32 %s51, %s52
    %s54 = smul.f32 %s38, %s36
    %s55 = sadd.f32 %s54, 0.0
    %s56 = smul.f32 %s39, %s38
    %s57 = sadd.f32 %s55, %s56
    %s58 = sadd.f32 %s48, 0.0
    %s59 = smul.f32 %s39, %s39
    %s60 = sadd.f32 %s58, %s59
    %s61 = smul.f32 %s36, %s41
    %s62 = sadd.f32 %s61, 0.0
    %s63 = smul.f32 %s37, %s43
    %s64 = sadd.f32 %s62, %s63
    %s65 = smul.f32 %s38, %s41
    %s66 = sadd.f32 %s65, 0.0
    %s67 = smul.f32 %s39, %s43
    %s68 = sadd.f32 %s66, %s67
    %s69 = sld [smem:[#allocation2]]
    %s70 = smul.f32 %s41, %s69
    %s71 = smul.f32 %s43, %s69
    %s72 = smul.f32 %s44, %s70
    %s73 = sadd.f32 %s72, 0.0
    %s74 = smul.f32 %s45, %s71
    %s75 = sadd.f32 %s73, %s74
    %s76 = scalar_lea.smem [#allocation7], 0
    %77 = sst [smem:[%s76]] %s75
    %s78 = sld [smem:[#allocation2 + $0x1]]
    %s79 = sld [smem:[#allocation2 + $0x2]]
    %s80 = smul.f32 %s36, %s70
    %s81 = sadd.f32 %s80, 0.0
    %s82 = smul.f32 %s37, %s71
    %s83 = sadd.f32 %s81, %s82
    %s84 = smul.f32 %s41, %s78
    %s85 = sadd.f32 %s83, %s84
    %s86 = smul.f32 %s38, %s70
    %s87 = sadd.f32 %s86, 0.0
    %s88 = smul.f32 %s39, %s71
    %s89 = sadd.f32 %s87, %s88
    %s90 = smul.f32 %s43, %s78
    %s91 = sadd.f32 %s89, %s90
    %s92 = smul.f32 %s49, %s70
    %s93 = sadd.f32 %s92, 0.0
    %s94 = smul.f32 %s53, %s71
    %s95 = sadd.f32 %s93, %s94
    %s96 = smul.f32 %s64, %s78
    %s97 = sadd.f32 %s95, %s96
    %s98 = smul.f32 %s41, %s79
    %s99 = sadd.f32 %s97, %s98
    %s100 = smul.f32 %s57, %s70
    %s101 = sadd.f32 %s100, 0.0
    %s102 = smul.f32 %s60, %s71
    %s103 = sadd.f32 %s101, %s102
    %s104 = smul.f32 %s68, %s78
    %s105 = sadd.f32 %s103, %s104
    %s106 = smul.f32 %s43, %s79
    %s107 = sadd.f32 %s105, %s106
    %s108 = smul.f32 %s44, %s85
    %s109 = sadd.f32 %s108, 0.0
    %s110 = smul.f32 %s45, %s91
    %s111 = sadd.f32 %s109, %s110
    %s112 = scalar_lea.smem [#allocation7], 1
    %113 = sst [smem:[%s112]] %s111
    %s114 = smul.f32 %s44, %s99
    %s115 = sadd.f32 %s114, 0.0
    %s116 = smul.f32 %s45, %s107
    %s117 = sadd.f32 %s115, %s116
    %s118 = scalar_lea.smem [#allocation7], 2
    %119 = sst [smem:[%s118]] %s117
    %s120 = sld [smem:[#allocation2 + $0x3]]
    %s121 = sld [smem:[#allocation2 + $0x4]]
    %s122 = smul.f32 %s36, %s99
    %s123 = sadd.f32 %s122, 0.0
    %s124 = smul.f32 %s37, %s107
    %s125 = sadd.f32 %s123, %s124
    %s126 = smul.f32 %s41, %s120
    %s127 = sadd.f32 %s125, %s126
    %s128 = smul.f32 %s38, %s99
    %s129 = sadd.f32 %s128, 0.0
    %s130 = smul.f32 %s39, %s107
    %s131 = sadd.f32 %s129, %s130
    %s132 = smul.f32 %s43, %s120
    %s133 = sadd.f32 %s131, %s132
    %s134 = smul.f32 %s49, %s99
    %s135 = sadd.f32 %s134, 0.0
    %s136 = smul.f32 %s53, %s107
    %s137 = sadd.f32 %s135, %s136
    %s138 = smul.f32 %s64, %s120
    %s139 = sadd.f32 %s137, %s138
    %s140 = smul.f32 %s41, %s121
    %s141 = sadd.f32 %s139, %s140
    %s142 = smul.f32 %s57, %s99
    %s143 = sadd.f32 %s142, 0.0
    %s144 = smul.f32 %s60, %s107
    %s145 = sadd.f32 %s143, %s144
    %s146 = smul.f32 %s68, %s120
    %s147 = sadd.f32 %s145, %s146
    %s148 = smul.f32 %s43, %s121
    %s149 = sadd.f32 %s147, %s148
    %s150 = smul.f32 %s44, %s127
    %s151 = sadd.f32 %s150, 0.0
    %s152 = smul.f32 %s45, %s133
    %s153 = sadd.f32 %s151, %s152
    %s154 = scalar_lea.smem [#allocation7], 3
    %155 = sst [smem:[%s154]] %s153
    %s156 = smul.f32 %s44, %s141
    %s157 = sadd.f32 %s156, 0.0
    %s158 = smul.f32 %s45, %s149
    %s159 = sadd.f32 %s157, %s158
    %s160 = scalar_lea.smem [#allocation7], 4
    %161 = sst [smem:[%s160]] %s159
    %s162 = sld [smem:[#allocation2 + $0x5]]
    %s163 = sld [smem:[#allocation2 + $0x6]]
    %s164 = smul.f32 %s36, %s141
    %s165 = sadd.f32 %s164, 0.0
    %s166 = smul.f32 %s37, %s149
    %s167 = sadd.f32 %s165, %s166
    %s168 = smul.f32 %s41, %s162
    %s169 = sadd.f32 %s167, %s168
    %s170 = smul.f32 %s38, %s141
    %s171 = sadd.f32 %s170, 0.0
    %s172 = smul.f32 %s39, %s149
    %s173 = sadd.f32 %s171, %s172
    %s174 = smul.f32 %s43, %s162
    %s175 = sadd.f32 %s173, %s174
    %s176 = smul.f32 %s49, %s141
    %s177 = sadd.f32 %s176, 0.0
    %s178 = smul.f32 %s53, %s149
    %s179 = sadd.f32 %s177, %s178
    %s180 = smul.f32 %s64, %s162
    %s181 = sadd.f32 %s179, %s180
    %s182 = smul.f32 %s41, %s163
    %s183 = sadd.f32 %s181, %s182
    %s184 = smul.f32 %s57, %s141
    %s185 = sadd.f32 %s184, 0.0
    %s186 = smul.f32 %s60, %s149
    %s187 = sadd.f32 %s185, %s186
    %s188 = smul.f32 %s68, %s162
    %s189 = sadd.f32 %s187, %s188
    %s190 = smul.f32 %s43, %s163
    %s191 = sadd.f32 %s189, %s190
    %s192 = smul.f32 %s44, %s169
    %s193 = sadd.f32 %s192, 0.0
    %s194 = smul.f32 %s45, %s175
    %s195 = sadd.f32 %s193, %s194
    %s196 = scalar_lea.smem [#allocation7], 5
    %197 = sst [smem:[%s196]] %s195
    %s198 = smul.f32 %s44, %s183
    %s199 = sadd.f32 %s198, 0.0
    %s200 = smul.f32 %s45, %s191
    %s201 = sadd.f32 %s199, %s200
    %s202 = scalar_lea.smem [#allocation7], 6
    %203 = sst [smem:[%s202]] %s201
    %s204 = sld [smem:[#allocation2 + $0x7]]
    %s205 = sld [smem:[#allocation2 + $0x8]]
    %s206 = smul.f32 %s36, %s183
    %s207 = sadd.f32 %s206, 0.0
    %s208 = smul.f32 %s37, %s191
    %s209 = sadd.f32 %s207, %s208
    %s210 = smul.f32 %s41, %s204
    %s211 = sadd.f32 %s209, %s210
    %s212 = smul.f32 %s38, %s183
    %s213 = sadd.f32 %s212, 0.0
    %s214 = smul.f32 %s39, %s191
    %s215 = sadd.f32 %s213, %s214
    %s216 = smul.f32 %s43, %s204
    %s217 = sadd.f32 %s215, %s216
    %s218 = smul.f32 %s49, %s183
    %s219 = sadd.f32 %s218, 0.0
    %s220 = smul.f32 %s53, %s191
    %s221 = sadd.f32 %s219, %s220
    %s222 = smul.f32 %s64, %s204
    %s223 = sadd.f32 %s221, %s222
    %s224 = smul.f32 %s41, %s205
    %s225 = sadd.f32 %s223, %s224
    %s226 = smul.f32 %s57, %s183
    %s227 = sadd.f32 %s226, 0.0
    %s228 = smul.f32 %s60, %s191
    %s229 = sadd.f32 %s227, %s228
    %s230 = smul.f32 %s68, %s204
    %s231 = sadd.f32 %s229, %s230
    %s232 = smul.f32 %s43, %s205
    %s233 = sadd.f32 %s231, %s232
    %s234 = smul.f32 %s44, %s211
    %s235 = sadd.f32 %s234, 0.0
    %s236 = smul.f32 %s45, %s217
    %s237 = sadd.f32 %s235, %s236
    %s238 = scalar_lea.smem [#allocation7], 7
    %239 = sst [smem:[%s238]] %s237
    %s240 = smul.f32 %s44, %s225
    %s241 = sadd.f32 %s240, 0.0
    %s242 = smul.f32 %s45, %s233
    %s243 = sadd.f32 %s241, %s242
    %s244 = scalar_lea.smem [#allocation7], 8
    %245 = sst [smem:[%s244]] %s243
    %s246 = sld [smem:[#allocation2 + $0x9]]
    %s247 = sld [smem:[#allocation2 + $0xa]]
    %s248 = smul.f32 %s36, %s225
    %s249 = sadd.f32 %s248, 0.0
    %s250 = smul.f32 %s37, %s233
    %s251 = sadd.f32 %s249, %s250
    %s252 = smul.f32 %s41, %s246
    %s253 = sadd.f32 %s251, %s252
    %s254 = smul.f32 %s38, %s225
    %s255 = sadd.f32 %s254, 0.0
    %s256 = smul.f32 %s39, %s233
    %s257 = sadd.f32 %s255, %s256
    %s258 = smul.f32 %s43, %s246
    %s259 = sadd.f32 %s257, %s258
    %s260 = smul.f32 %s49, %s225
    %s261 = sadd.f32 %s260, 0.0
    %s262 = smul.f32 %s53, %s233
    %s263 = sadd.f32 %s261, %s262
    %s264 = smul.f32 %s64, %s246
    %s265 = sadd.f32 %s263, %s264
    %s266 = smul.f32 %s41, %s247
    %s267 = sadd.f32 %s265, %s266
    %s268 = smul.f32 %s57, %s225
    %s269 = sadd.f32 %s268, 0.0
    %s270 = smul.f32 %s60, %s233
    %s271 = sadd.f32 %s269, %s270
    %s272 = smul.f32 %s68, %s246
    %s273 = sadd.f32 %s271, %s272
    %s274 = smul.f32 %s43, %s247
    %s275 = sadd.f32 %s273, %s274
    %s276 = smul.f32 %s44, %s253
    %s277 = sadd.f32 %s276, 0.0
    %s278 = smul.f32 %s45, %s259
    %s279 = sadd.f32 %s277, %s278
    %s280 = scalar_lea.smem [#allocation7], 9
    %281 = sst [smem:[%s280]] %s279
    %s282 = smul.f32 %s44, %s267
    %s283 = sadd.f32 %s282, 0.0
    %s284 = smul.f32 %s45, %s275
    %s285 = sadd.f32 %s283, %s284
    %s286 = scalar_lea.smem [#allocation7], 10
    %287 = sst [smem:[%s286]] %s285
    %s288 = sld [smem:[#allocation2 + $0xb]]
    %s289 = sld [smem:[#allocation2 + $0xc]]
    %s290 = smul.f32 %s36, %s267
    %s291 = sadd.f32 %s290, 0.0
    %s292 = smul.f32 %s37, %s275
    %s293 = sadd.f32 %s291, %s292
    %s294 = smul.f32 %s41, %s288
    %s295 = sadd.f32 %s293, %s294
    %s296 = smul.f32 %s38, %s267
    %s297 = sadd.f32 %s296, 0.0
    %s298 = smul.f32 %s39, %s275
    %s299 = sadd.f32 %s297, %s298
    %s300 = smul.f32 %s43, %s288
    %s301 = sadd.f32 %s299, %s300
    %s302 = smul.f32 %s49, %s267
    %s303 = sadd.f32 %s302, 0.0
    %s304 = smul.f32 %s53, %s275
    %s305 = sadd.f32 %s303, %s304
    %s306 = smul.f32 %s64, %s288
    %s307 = sadd.f32 %s305, %s306
    %s308 = smul.f32 %s41, %s289
    %s309 = sadd.f32 %s307, %s308
    %s310 = smul.f32 %s57, %s267
    %s311 = sadd.f32 %s310, 0.0
    %s312 = smul.f32 %s60, %s275
    %s313 = sadd.f32 %s311, %s312
    %s314 = smul.f32 %s68, %s288
    %s315 = sadd.f32 %s313, %s314
    %s316 = smul.f32 %s43, %s289
    %s317 = sadd.f32 %s315, %s316
    %s318 = smul.f32 %s44, %s295
    %s319 = sadd.f32 %s318, 0.0
    %s320 = smul.f32 %s45, %s301
    %s321 = sadd.f32 %s319, %s320
    %s322 = scalar_lea.smem [#allocation7], 11
    %323 = sst [smem:[%s322]] %s321
    %s324 = smul.f32 %s44, %s309
    %s325 = sadd.f32 %s324, 0.0
    %s326 = smul.f32 %s45, %s317
    %s327 = sadd.f32 %s325, %s326
    %s328 = scalar_lea.smem [#allocation7], 12
    %329 = sst [smem:[%s328]] %s327
    %s330 = sld [smem:[#allocation2 + $0xd]]
    %s331 = sld [smem:[#allocation2 + $0xe]]
    %s332 = smul.f32 %s36, %s309
    %s333 = sadd.f32 %s332, 0.0
    %s334 = smul.f32 %s37, %s317
    %s335 = sadd.f32 %s333, %s334
    %s336 = smul.f32 %s41, %s330
    %s337 = sadd.f32 %s335, %s336
    %s338 = smul.f32 %s38, %s309
    %s339 = sadd.f32 %s338, 0.0
    %s340 = smul.f32 %s39, %s317
    %s341 = sadd.f32 %s339, %s340
    %s342 = smul.f32 %s43, %s330
    %s343 = sadd.f32 %s341, %s342
    %s344 = smul.f32 %s49, %s309
    %s345 = sadd.f32 %s344, 0.0
    %s346 = smul.f32 %s53, %s317
    %s347 = sadd.f32 %s345, %s346
    %s348 = smul.f32 %s64, %s330
    %s349 = sadd.f32 %s347, %s348
    %s350 = smul.f32 %s41, %s331
    %s351 = sadd.f32 %s349, %s350
    %s352 = smul.f32 %s57, %s309
    %s353 = sadd.f32 %s352, 0.0
    %s354 = smul.f32 %s60, %s317
    %s355 = sadd.f32 %s353, %s354
    %s356 = smul.f32 %s68, %s330
    %s357 = sadd.f32 %s355, %s356
    %s358 = smul.f32 %s43, %s331
    %s359 = sadd.f32 %s357, %s358
    %s360 = smul.f32 %s44, %s337
    %s361 = sadd.f32 %s360, 0.0
    %s362 = smul.f32 %s45, %s343
    %s363 = sadd.f32 %s361, %s362
    %s364 = scalar_lea.smem [#allocation7], 13
    %365 = sst [smem:[%s364]] %s363
    %s366 = smul.f32 %s44, %s351
    %s367 = sadd.f32 %s366, 0.0
    %s368 = smul.f32 %s45, %s359
    %s369 = sadd.f32 %s367, %s368
    %s370 = scalar_lea.smem [#allocation7], 14
    %371 = sst [smem:[%s370]] %s369
    %s372 = sld [smem:[#allocation2 + $0xf]]
    %s373 = sld [smem:[#allocation2 + $0x10]]
    %s374 = smul.f32 %s36, %s351
    %s375 = sadd.f32 %s374, 0.0
    %s376 = smul.f32 %s37, %s359
    %s377 = sadd.f32 %s375, %s376
    %s378 = smul.f32 %s41, %s372
    %s379 = sadd.f32 %s377, %s378
    %s380 = smul.f32 %s38, %s351
    %s381 = sadd.f32 %s380, 0.0
    %s382 = smul.f32 %s39, %s359
    %s383 = sadd.f32 %s381, %s382
    %s384 = smul.f32 %s43, %s372
    %s385 = sadd.f32 %s383, %s384
    %s386 = smul.f32 %s49, %s351
    %s387 = sadd.f32 %s386, 0.0
    %s388 = smul.f32 %s53, %s359
    %s389 = sadd.f32 %s387, %s388
    %s390 = smul.f32 %s64, %s372
    %s391 = sadd.f32 %s389, %s390
    %s392 = smul.f32 %s41, %s373
    %s393 = sadd.f32 %s391, %s392
    %s394 = smul.f32 %s57, %s351
    %s395 = sadd.f32 %s394, 0.0
    %s396 = smul.f32 %s60, %s359
    %s397 = sadd.f32 %s395, %s396
    %s398 = smul.f32 %s68, %s372
    %s399 = sadd.f32 %s397, %s398
    %s400 = smul.f32 %s43, %s373
    %s401 = sadd.f32 %s399, %s400
    %s402 = smul.f32 %s44, %s379
    %s403 = sadd.f32 %s402, 0.0
    %s404 = smul.f32 %s45, %s385
    %s405 = sadd.f32 %s403, %s404
    %s406 = scalar_lea.smem [#allocation7], 15
    %407 = sst [smem:[%s406]] %s405
    %s408 = smul.f32 %s44, %s393
    %s409 = sadd.f32 %s408, 0.0
    %s410 = smul.f32 %s45, %s401
    %s411 = sadd.f32 %s409, %s410
    %s412 = scalar_lea.smem [#allocation7], 16
    %413 = sst [smem:[%s412]] %s411
    %s414 = sld [smem:[#allocation2 + $0x11]]
    %s415 = sld [smem:[#allocation2 + $0x12]]
    %s416 = smul.f32 %s36, %s393
    %s417 = sadd.f32 %s416, 0.0
    %s418 = smul.f32 %s37, %s401
    %s419 = sadd.f32 %s417, %s418
    %s420 = smul.f32 %s41, %s414
    %s421 = sadd.f32 %s419, %s420
    %s422 = smul.f32 %s38, %s393
    %s423 = sadd.f32 %s422, 0.0
    %s424 = smul.f32 %s39, %s401
    %s425 = sadd.f32 %s423, %s424
    %s426 = smul.f32 %s43, %s414
    %s427 = sadd.f32 %s425, %s426
    %s428 = smul.f32 %s49, %s393
    %s429 = sadd.f32 %s428, 0.0
    %s430 = smul.f32 %s53, %s401
    %s431 = sadd.f32 %s429, %s430
    %s432 = smul.f32 %s64, %s414
    %s433 = sadd.f32 %s431, %s432
    %s434 = smul.f32 %s41, %s415
    %s435 = sadd.f32 %s433, %s434
    %s436 = smul.f32 %s57, %s393
    %s437 = sadd.f32 %s436, 0.0
    %s438 = smul.f32 %s60, %s401
    %s439 = sadd.f32 %s437, %s438
    %s440 = smul.f32 %s68, %s414
    %s441 = sadd.f32 %s439, %s440
    %s442 = smul.f32 %s43, %s415
    %s443 = sadd.f32 %s441, %s442
    %s444 = smul.f32 %s44, %s421
    %s445 = sadd.f32 %s444, 0.0
    %s446 = smul.f32 %s45, %s427
    %s447 = sadd.f32 %s445, %s446
    %s448 = scalar_lea.smem [#allocation7], 17
    %449 = sst [smem:[%s448]] %s447
    %s450 = smul.f32 %s44, %s435
    %s451 = sadd.f32 %s450, 0.0
    %s452 = smul.f32 %s45, %s443
    %s453 = sadd.f32 %s451, %s452
    %s454 = scalar_lea.smem [#allocation7], 18
    %455 = sst [smem:[%s454]] %s453
    %s456 = sld [smem:[#allocation2 + $0x13]]
    %s457 = sld [smem:[#allocation2 + $0x14]]
    %s458 = smul.f32 %s36, %s435
    %s459 = sadd.f32 %s458, 0.0
    %s460 = smul.f32 %s37, %s443
    %s461 = sadd.f32 %s459, %s460
    %s462 = smul.f32 %s41, %s456
    %s463 = sadd.f32 %s461, %s462
    %s464 = smul.f32 %s38, %s435
    %s465 = sadd.f32 %s464, 0.0
    %s466 = smul.f32 %s39, %s443
    %s467 = sadd.f32 %s465, %s466
    %s468 = smul.f32 %s43, %s456
    %s469 = sadd.f32 %s467, %s468
    %s470 = smul.f32 %s49, %s435
    %s471 = sadd.f32 %s470, 0.0
    %s472 = smul.f32 %s53, %s443
    %s473 = sadd.f32 %s471, %s472
    %s474 = smul.f32 %s64, %s456
    %s475 = sadd.f32 %s473, %s474
    %s476 = smul.f32 %s41, %s457
    %s477 = sadd.f32 %s475, %s476
    %s478 = smul.f32 %s57, %s435
    %s479 = sadd.f32 %s478, 0.0
    %s480 = smul.f32 %s60, %s443
    %s481 = sadd.f32 %s479, %s480
    %s482 = smul.f32 %s68, %s456
    %s483 = sadd.f32 %s481, %s482
    %s484 = smul.f32 %s43, %s457
    %s485 = sadd.f32 %s483, %s484
    %s486 = smul.f32 %s44, %s463
    %s487 = sadd.f32 %s486, 0.0
    %s488 = smul.f32 %s45, %s469
    %s489 = sadd.f32 %s487, %s488
    %s490 = scalar_lea.smem [#allocation7], 19
    %491 = sst [smem:[%s490]] %s489
    %s492 = smul.f32 %s44, %s477
    %s493 = sadd.f32 %s492, 0.0
    %s494 = smul.f32 %s45, %s485
    %s495 = sadd.f32 %s493, %s494
    %s496 = scalar_lea.smem [#allocation7], 20
    %497 = sst [smem:[%s496]] %s495
    %s498 = sld [smem:[#allocation2 + $0x15]]
    %s499 = sld [smem:[#allocation2 + $0x16]]
    %s500 = smul.f32 %s36, %s477
    %s501 = sadd.f32 %s500, 0.0
    %s502 = smul.f32 %s37, %s485
    %s503 = sadd.f32 %s501, %s502
    %s504 = smul.f32 %s41, %s498
    %s505 = sadd.f32 %s503, %s504
    %s506 = smul.f32 %s38, %s477
    %s507 = sadd.f32 %s506, 0.0
    %s508 = smul.f32 %s39, %s485
    %s509 = sadd.f32 %s507, %s508
    %s510 = smul.f32 %s43, %s498
    %s511 = sadd.f32 %s509, %s510
    %s512 = smul.f32 %s49, %s477
    %s513 = sadd.f32 %s512, 0.0
    %s514 = smul.f32 %s53, %s485
    %s515 = sadd.f32 %s513, %s514
    %s516 = smul.f32 %s64, %s498
    %s517 = sadd.f32 %s515, %s516
    %s518 = smul.f32 %s41, %s499
    %s519 = sadd.f32 %s517, %s518
    %s520 = smul.f32 %s57, %s477
    %s521 = sadd.f32 %s520, 0.0
    %s522 = smul.f32 %s60, %s485
    %s523 = sadd.f32 %s521, %s522
    %s524 = smul.f32 %s68, %s498
    %s525 = sadd.f32 %s523, %s524
    %s526 = smul.f32 %s43, %s499
    %s527 = sadd.f32 %s525, %s526
    %s528 = smul.f32 %s44, %s505
    %s529 = sadd.f32 %s528, 0.0
    %s530 = smul.f32 %s45, %s511
    %s531 = sadd.f32 %s529, %s530
    %s532 = scalar_lea.smem [#allocation7], 21
    %533 = sst [smem:[%s532]] %s531
    %s534 = smul.f32 %s44, %s519
    %s535 = sadd.f32 %s534, 0.0
    %s536 = smul.f32 %s45, %s527
    %s537 = sadd.f32 %s535, %s536
    %s538 = scalar_lea.smem [#allocation7], 22
    %539 = sst [smem:[%s538]] %s537
    %s540 = sld [smem:[#allocation2 + $0x17]]
    %s541 = sld [smem:[#allocation2 + $0x18]]
    %s542 = smul.f32 %s36, %s519
    %s543 = sadd.f32 %s542, 0.0
    %s544 = smul.f32 %s37, %s527
    %s545 = sadd.f32 %s543, %s544
    %s546 = smul.f32 %s41, %s540
    %s547 = sadd.f32 %s545, %s546
    %s548 = smul.f32 %s38, %s519
    %s549 = sadd.f32 %s548, 0.0
    %s550 = smul.f32 %s39, %s527
    %s551 = sadd.f32 %s549, %s550
    %s552 = smul.f32 %s43, %s540
    %s553 = sadd.f32 %s551, %s552
    %s554 = smul.f32 %s49, %s519
    %s555 = sadd.f32 %s554, 0.0
    %s556 = smul.f32 %s53, %s527
    %s557 = sadd.f32 %s555, %s556
    %s558 = smul.f32 %s64, %s540
    %s559 = sadd.f32 %s557, %s558
    %s560 = smul.f32 %s41, %s541
    %s561 = sadd.f32 %s559, %s560
    %s562 = smul.f32 %s57, %s519
    %s563 = sadd.f32 %s562, 0.0
    %s564 = smul.f32 %s60, %s527
    %s565 = sadd.f32 %s563, %s564
    %s566 = smul.f32 %s68, %s540
    %s567 = sadd.f32 %s565, %s566
    %s568 = smul.f32 %s43, %s541
    %s569 = sadd.f32 %s567, %s568
    %s570 = smul.f32 %s44, %s547
    %s571 = sadd.f32 %s570, 0.0
    %s572 = smul.f32 %s45, %s553
    %s573 = sadd.f32 %s571, %s572
    %s574 = scalar_lea.smem [#allocation7], 23
    %575 = sst [smem:[%s574]] %s573
    %s576 = smul.f32 %s44, %s561
    %s577 = sadd.f32 %s576, 0.0
    %s578 = smul.f32 %s45, %s569
    %s579 = sadd.f32 %s577, %s578
    %s580 = scalar_lea.smem [#allocation7], 24
    %581 = sst [smem:[%s580]] %s579
    %s582 = sld [smem:[#allocation2 + $0x19]]
    %s583 = sld [smem:[#allocation2 + $0x1a]]
    %s584 = smul.f32 %s36, %s561
    %s585 = sadd.f32 %s584, 0.0
    %s586 = smul.f32 %s37, %s569
    %s587 = sadd.f32 %s585, %s586
    %s588 = smul.f32 %s41, %s582
    %s589 = sadd.f32 %s587, %s588
    %s590 = smul.f32 %s38, %s561
    %s591 = sadd.f32 %s590, 0.0
    %s592 = smul.f32 %s39, %s569
    %s593 = sadd.f32 %s591, %s592
    %s594 = smul.f32 %s43, %s582
    %s595 = sadd.f32 %s593, %s594
    %s596 = smul.f32 %s49, %s561
    %s597 = sadd.f32 %s596, 0.0
    %s598 = smul.f32 %s53, %s569
    %s599 = sadd.f32 %s597, %s598
    %s600 = smul.f32 %s64, %s582
    %s601 = sadd.f32 %s599, %s600
    %s602 = smul.f32 %s41, %s583
    %s603 = sadd.f32 %s601, %s602
    %s604 = smul.f32 %s57, %s561
    %s605 = sadd.f32 %s604, 0.0
    %s606 = smul.f32 %s60, %s569
    %s607 = sadd.f32 %s605, %s606
    %s608 = smul.f32 %s68, %s582
    %s609 = sadd.f32 %s607, %s608
    %s610 = smul.f32 %s43, %s583
    %s611 = sadd.f32 %s609, %s610
    %s612 = smul.f32 %s44, %s589
    %s613 = sadd.f32 %s612, 0.0
    %s614 = smul.f32 %s45, %s595
    %s615 = sadd.f32 %s613, %s614
    %s616 = scalar_lea.smem [#allocation7], 25
    %617 = sst [smem:[%s616]] %s615
    %s618 = smul.f32 %s44, %s603
    %s619 = sadd.f32 %s618, 0.0
    %s620 = smul.f32 %s45, %s611
    %s621 = sadd.f32 %s619, %s620
    %s622 = scalar_lea.smem [#allocation7], 26
    %623 = sst [smem:[%s622]] %s621
    %s624 = sld [smem:[#allocation2 + $0x1b]]
    %s625 = sld [smem:[#allocation2 + $0x1c]]
    %s626 = smul.f32 %s36, %s603
    %s627 = sadd.f32 %s626, 0.0
    %s628 = smul.f32 %s37, %s611
    %s629 = sadd.f32 %s627, %s628
    %s630 = smul.f32 %s41, %s624
    %s631 = sadd.f32 %s629, %s630
    %s632 = smul.f32 %s38, %s603
    %s633 = sadd.f32 %s632, 0.0
    %s634 = smul.f32 %s39, %s611
    %s635 = sadd.f32 %s633, %s634
    %s636 = smul.f32 %s43, %s624
    %s637 = sadd.f32 %s635, %s636
    %s638 = smul.f32 %s49, %s603
    %s639 = sadd.f32 %s638, 0.0
    %s640 = smul.f32 %s53, %s611
    %s641 = sadd.f32 %s639, %s640
    %s642 = smul.f32 %s64, %s624
    %s643 = sadd.f32 %s641, %s642
    %s644 = smul.f32 %s41, %s625
    %s645 = sadd.f32 %s643, %s644
    %s646 = smul.f32 %s57, %s603
    %s647 = sadd.f32 %s646, 0.0
    %s648 = smul.f32 %s60, %s611
    %s649 = sadd.f32 %s647, %s648
    %s650 = smul.f32 %s68, %s624
    %s651 = sadd.f32 %s649, %s650
    %s652 = smul.f32 %s43, %s625
    %s653 = sadd.f32 %s651, %s652
    %s654 = smul.f32 %s44, %s631
    %s655 = sadd.f32 %s654, 0.0
    %s656 = smul.f32 %s45, %s637
    %s657 = sadd.f32 %s655, %s656
    %s658 = scalar_lea.smem [#allocation7], 27
    %659 = sst [smem:[%s658]] %s657
    %s660 = smul.f32 %s44, %s645
    %s661 = sadd.f32 %s660, 0.0
    %s662 = smul.f32 %s45, %s653
    %s663 = sadd.f32 %s661, %s662
    %s664 = scalar_lea.smem [#allocation7], 28
    %665 = sst [smem:[%s664]] %s663
    %s666 = sld [smem:[#allocation2 + $0x1d]]
    %s667 = sld [smem:[#allocation2 + $0x1e]]
    %s668 = smul.f32 %s36, %s645
    %s669 = sadd.f32 %s668, 0.0
    %s670 = smul.f32 %s37, %s653
    %s671 = sadd.f32 %s669, %s670
    %s672 = smul.f32 %s41, %s666
    %s673 = sadd.f32 %s671, %s672
    %s674 = smul.f32 %s38, %s645
    %s675 = sadd.f32 %s674, 0.0
    %s676 = smul.f32 %s39, %s653
    %s677 = sadd.f32 %s675, %s676
    %s678 = smul.f32 %s43, %s666
    %s679 = sadd.f32 %s677, %s678
    %s680 = smul.f32 %s49, %s645
    %s681 = sadd.f32 %s680, 0.0
    %s682 = smul.f32 %s53, %s653
    %s683 = sadd.f32 %s681, %s682
    %s684 = smul.f32 %s64, %s666
    %s685 = sadd.f32 %s683, %s684
    %s686 = smul.f32 %s41, %s667
    %s687 = sadd.f32 %s685, %s686
    %s688 = smul.f32 %s57, %s645
    %s689 = sadd.f32 %s688, 0.0
    %s690 = smul.f32 %s60, %s653
    %s691 = sadd.f32 %s689, %s690
    %s692 = smul.f32 %s68, %s666
    %s693 = sadd.f32 %s691, %s692
    %s694 = smul.f32 %s43, %s667
    %s695 = sadd.f32 %s693, %s694
    %s696 = smul.f32 %s44, %s673
    %s697 = sadd.f32 %s696, 0.0
    %s698 = smul.f32 %s45, %s679
    %s699 = sadd.f32 %s697, %s698
    %s700 = scalar_lea.smem [#allocation7], 29
    %701 = sst [smem:[%s700]] %s699
    %s702 = smul.f32 %s44, %s687
    %s703 = sadd.f32 %s702, 0.0
    %s704 = smul.f32 %s45, %s695
    %s705 = sadd.f32 %s703, %s704
    %s706 = scalar_lea.smem [#allocation7], 30
    %707 = sst [smem:[%s706]] %s705
    %s708 = sld [smem:[#allocation2 + $0x1f]]
    %s709 = sld [smem:[#allocation2 + $0x20]]
    %s710 = smul.f32 %s36, %s687
    %s711 = sadd.f32 %s710, 0.0
    %s712 = smul.f32 %s37, %s695
    %s713 = sadd.f32 %s711, %s712
    %s714 = smul.f32 %s41, %s708
    %s715 = sadd.f32 %s713, %s714
    %s716 = smul.f32 %s38, %s687
    %s717 = sadd.f32 %s716, 0.0
    %s718 = smul.f32 %s39, %s695
    %s719 = sadd.f32 %s717, %s718
    %s720 = smul.f32 %s43, %s708
    %s721 = sadd.f32 %s719, %s720
    %s722 = smul.f32 %s49, %s687
    %s723 = sadd.f32 %s722, 0.0
    %s724 = smul.f32 %s53, %s695
    %s725 = sadd.f32 %s723, %s724
    %s726 = smul.f32 %s64, %s708
    %s727 = sadd.f32 %s725, %s726
    %s728 = smul.f32 %s41, %s709
    %s729 = sadd.f32 %s727, %s728
    %s730 = smul.f32 %s57, %s687
    %s731 = sadd.f32 %s730, 0.0
    %s732 = smul.f32 %s60, %s695
    %s733 = sadd.f32 %s731, %s732
    %s734 = smul.f32 %s68, %s708
    %s735 = sadd.f32 %s733, %s734
    %s736 = smul.f32 %s43, %s709
    %s737 = sadd.f32 %s735, %s736
    %s738 = smul.f32 %s44, %s715
    %s739 = sadd.f32 %s738, 0.0
    %s740 = smul.f32 %s45, %s721
    %s741 = sadd.f32 %s739, %s740
    %s742 = scalar_lea.smem [#allocation7], 31
    %743 = sst [smem:[%s742]] %s741
    %s744 = smul.f32 %s44, %s729
    %s745 = sadd.f32 %s744, 0.0
    %s746 = smul.f32 %s45, %s737
    %s747 = sadd.f32 %s745, %s746
    %s748 = scalar_lea.smem [#allocation7], 32
    %749 = sst [smem:[%s748]] %s747
    %s750 = sld [smem:[#allocation2 + $0x21]]
    %s751 = sld [smem:[#allocation2 + $0x22]]
    %s752 = smul.f32 %s36, %s729
    %s753 = sadd.f32 %s752, 0.0
    %s754 = smul.f32 %s37, %s737
    %s755 = sadd.f32 %s753, %s754
    %s756 = smul.f32 %s41, %s750
    %s757 = sadd.f32 %s755, %s756
    %s758 = smul.f32 %s38, %s729
    %s759 = sadd.f32 %s758, 0.0
    %s760 = smul.f32 %s39, %s737
    %s761 = sadd.f32 %s759, %s760
    %s762 = smul.f32 %s43, %s750
    %s763 = sadd.f32 %s761, %s762
    %s764 = smul.f32 %s49, %s729
    %s765 = sadd.f32 %s764, 0.0
    %s766 = smul.f32 %s53, %s737
    %s767 = sadd.f32 %s765, %s766
    %s768 = smul.f32 %s64, %s750
    %s769 = sadd.f32 %s767, %s768
    %s770 = smul.f32 %s41, %s751
    %s771 = sadd.f32 %s769, %s770
    %s772 = smul.f32 %s57, %s729
    %s773 = sadd.f32 %s772, 0.0
    %s774 = smul.f32 %s60, %s737
    %s775 = sadd.f32 %s773, %s774
    %s776 = smul.f32 %s68, %s750
    %s777 = sadd.f32 %s775, %s776
    %s778 = smul.f32 %s43, %s751
    %s779 = sadd.f32 %s777, %s778
    %s780 = smul.f32 %s44, %s757
    %s781 = sadd.f32 %s780, 0.0
    %s782 = smul.f32 %s45, %s763
    %s783 = sadd.f32 %s781, %s782
    %s784 = scalar_lea.smem [#allocation7], 33
    %785 = sst [smem:[%s784]] %s783
    %s786 = smul.f32 %s44, %s771
    %s787 = sadd.f32 %s786, 0.0
    %s788 = smul.f32 %s45, %s779
    %s789 = sadd.f32 %s787, %s788
    %s790 = scalar_lea.smem [#allocation7], 34
    %791 = sst [smem:[%s790]] %s789
    %s792 = sld [smem:[#allocation2 + $0x23]]
    %s793 = sld [smem:[#allocation2 + $0x24]]
    %s794 = smul.f32 %s36, %s771
    %s795 = sadd.f32 %s794, 0.0
    %s796 = smul.f32 %s37, %s779
    %s797 = sadd.f32 %s795, %s796
    %s798 = smul.f32 %s41, %s792
    %s799 = sadd.f32 %s797, %s798
    %s800 = smul.f32 %s38, %s771
    %s801 = sadd.f32 %s800, 0.0
    %s802 = smul.f32 %s39, %s779
    %s803 = sadd.f32 %s801, %s802
    %s804 = smul.f32 %s43, %s792
    %s805 = sadd.f32 %s803, %s804
    %s806 = smul.f32 %s49, %s771
    %s807 = sadd.f32 %s806, 0.0
    %s808 = smul.f32 %s53, %s779
    %s809 = sadd.f32 %s807, %s808
    %s810 = smul.f32 %s64, %s792
    %s811 = sadd.f32 %s809, %s810
    %s812 = smul.f32 %s41, %s793
    %s813 = sadd.f32 %s811, %s812
    %s814 = smul.f32 %s57, %s771
    %s815 = sadd.f32 %s814, 0.0
    %s816 = smul.f32 %s60, %s779
    %s817 = sadd.f32 %s815, %s816
    %s818 = smul.f32 %s68, %s792
    %s819 = sadd.f32 %s817, %s818
    %s820 = smul.f32 %s43, %s793
    %s821 = sadd.f32 %s819, %s820
    %s822 = smul.f32 %s44, %s799
    %s823 = sadd.f32 %s822, 0.0
    %s824 = smul.f32 %s45, %s805
    %s825 = sadd.f32 %s823, %s824
    %s826 = scalar_lea.smem [#allocation7], 35
    %827 = sst [smem:[%s826]] %s825
    %s828 = smul.f32 %s44, %s813
    %s829 = sadd.f32 %s828, 0.0
    %s830 = smul.f32 %s45, %s821
    %s831 = sadd.f32 %s829, %s830
    %s832 = scalar_lea.smem [#allocation7], 36
    %833 = sst [smem:[%s832]] %s831
    %s834 = sld [smem:[#allocation2 + $0x25]]
    %s835 = sld [smem:[#allocation2 + $0x26]]
    %s836 = smul.f32 %s36, %s813
    %s837 = sadd.f32 %s836, 0.0
    %s838 = smul.f32 %s37, %s821
    %s839 = sadd.f32 %s837, %s838
    %s840 = smul.f32 %s41, %s834
    %s841 = sadd.f32 %s839, %s840
    %s842 = smul.f32 %s38, %s813
    %s843 = sadd.f32 %s842, 0.0
    %s844 = smul.f32 %s39, %s821
    %s845 = sadd.f32 %s843, %s844
    %s846 = smul.f32 %s43, %s834
    %s847 = sadd.f32 %s845, %s846
    %s848 = smul.f32 %s49, %s813
    %s849 = sadd.f32 %s848, 0.0
    %s850 = smul.f32 %s53, %s821
    %s851 = sadd.f32 %s849, %s850
    %s852 = smul.f32 %s64, %s834
    %s853 = sadd.f32 %s851, %s852
    %s854 = smul.f32 %s41, %s835
    %s855 = sadd.f32 %s853, %s854
    %s856 = smul.f32 %s57, %s813
    %s857 = sadd.f32 %s856, 0.0
    %s858 = smul.f32 %s60, %s821
    %s859 = sadd.f32 %s857, %s858
    %s860 = smul.f32 %s68, %s834
    %s861 = sadd.f32 %s859, %s860
    %s862 = smul.f32 %s43, %s835
    %s863 = sadd.f32 %s861, %s862
    %s864 = smul.f32 %s44, %s841
    %s865 = sadd.f32 %s864, 0.0
    %s866 = smul.f32 %s45, %s847
    %s867 = sadd.f32 %s865, %s866
    %s868 = scalar_lea.smem [#allocation7], 37
    %869 = sst [smem:[%s868]] %s867
    %s870 = smul.f32 %s44, %s855
    %s871 = sadd.f32 %s870, 0.0
    %s872 = smul.f32 %s45, %s863
    %s873 = sadd.f32 %s871, %s872
    %s874 = scalar_lea.smem [#allocation7], 38
    %875 = sst [smem:[%s874]] %s873
    %s876 = sld [smem:[#allocation2 + $0x27]]
    %s877 = sld [smem:[#allocation2 + $0x28]]
    %s878 = smul.f32 %s36, %s855
    %s879 = sadd.f32 %s878, 0.0
    %s880 = smul.f32 %s37, %s863
    %s881 = sadd.f32 %s879, %s880
    %s882 = smul.f32 %s41, %s876
    %s883 = sadd.f32 %s881, %s882
    %s884 = smul.f32 %s38, %s855
    %s885 = sadd.f32 %s884, 0.0
    %s886 = smul.f32 %s39, %s863
    %s887 = sadd.f32 %s885, %s886
    %s888 = smul.f32 %s43, %s876
    %s889 = sadd.f32 %s887, %s888
    %s890 = smul.f32 %s49, %s855
    %s891 = sadd.f32 %s890, 0.0
    %s892 = smul.f32 %s53, %s863
    %s893 = sadd.f32 %s891, %s892
    %s894 = smul.f32 %s64, %s876
    %s895 = sadd.f32 %s893, %s894
    %s896 = smul.f32 %s41, %s877
    %s897 = sadd.f32 %s895, %s896
    %s898 = smul.f32 %s57, %s855
    %s899 = sadd.f32 %s898, 0.0
    %s900 = smul.f32 %s60, %s863
    %s901 = sadd.f32 %s899, %s900
    %s902 = smul.f32 %s68, %s876
    %s903 = sadd.f32 %s901, %s902
    %s904 = smul.f32 %s43, %s877
    %s905 = sadd.f32 %s903, %s904
    %s906 = smul.f32 %s44, %s883
    %s907 = sadd.f32 %s906, 0.0
    %s908 = smul.f32 %s45, %s889
    %s909 = sadd.f32 %s907, %s908
    %s910 = scalar_lea.smem [#allocation7], 39
    %911 = sst [smem:[%s910]] %s909
    %s912 = smul.f32 %s44, %s897
    %s913 = sadd.f32 %s912, 0.0
    %s914 = smul.f32 %s45, %s905
    %s915 = sadd.f32 %s913, %s914
    %s916 = scalar_lea.smem [#allocation7], 40
    %917 = sst [smem:[%s916]] %s915
    %s918 = sld [smem:[#allocation2 + $0x29]]
    %s919 = sld [smem:[#allocation2 + $0x2a]]
    %s920 = smul.f32 %s36, %s897
    %s921 = sadd.f32 %s920, 0.0
    %s922 = smul.f32 %s37, %s905
    %s923 = sadd.f32 %s921, %s922
    %s924 = smul.f32 %s41, %s918
    %s925 = sadd.f32 %s923, %s924
    %s926 = smul.f32 %s38, %s897
    %s927 = sadd.f32 %s926, 0.0
    %s928 = smul.f32 %s39, %s905
    %s929 = sadd.f32 %s927, %s928
    %s930 = smul.f32 %s43, %s918
    %s931 = sadd.f32 %s929, %s930
    %s932 = smul.f32 %s49, %s897
    %s933 = sadd.f32 %s932, 0.0
    %s934 = smul.f32 %s53, %s905
    %s935 = sadd.f32 %s933, %s934
    %s936 = smul.f32 %s64, %s918
    %s937 = sadd.f32 %s935, %s936
    %s938 = smul.f32 %s41, %s919
    %s939 = sadd.f32 %s937, %s938
    %s940 = smul.f32 %s57, %s897
    %s941 = sadd.f32 %s940, 0.0
    %s942 = smul.f32 %s60, %s905
    %s943 = sadd.f32 %s941, %s942
    %s944 = smul.f32 %s68, %s918
    %s945 = sadd.f32 %s943, %s944
    %s946 = smul.f32 %s43, %s919
    %s947 = sadd.f32 %s945, %s946
    %s948 = smul.f32 %s44, %s925
    %s949 = sadd.f32 %s948, 0.0
    %s950 = smul.f32 %s45, %s931
    %s951 = sadd.f32 %s949, %s950
    %s952 = scalar_lea.smem [#allocation7], 41
    %953 = sst [smem:[%s952]] %s951
    %s954 = smul.f32 %s44, %s939
    %s955 = sadd.f32 %s954, 0.0
    %s956 = smul.f32 %s45, %s947
    %s957 = sadd.f32 %s955, %s956
    %s958 = scalar_lea.smem [#allocation7], 42
    %959 = sst [smem:[%s958]] %s957
    %s960 = sld [smem:[#allocation2 + $0x2b]]
    %s961 = sld [smem:[#allocation2 + $0x2c]]
    %s962 = smul.f32 %s36, %s939
    %s963 = sadd.f32 %s962, 0.0
    %s964 = smul.f32 %s37, %s947
    %s965 = sadd.f32 %s963, %s964
    %s966 = smul.f32 %s41, %s960
    %s967 = sadd.f32 %s965, %s966
    %s968 = smul.f32 %s38, %s939
    %s969 = sadd.f32 %s968, 0.0
    %s970 = smul.f32 %s39, %s947
    %s971 = sadd.f32 %s969, %s970
    %s972 = smul.f32 %s43, %s960
    %s973 = sadd.f32 %s971, %s972
    %s974 = smul.f32 %s49, %s939
    %s975 = sadd.f32 %s974, 0.0
    %s976 = smul.f32 %s53, %s947
    %s977 = sadd.f32 %s975, %s976
    %s978 = smul.f32 %s64, %s960
    %s979 = sadd.f32 %s977, %s978
    %s980 = smul.f32 %s41, %s961
    %s981 = sadd.f32 %s979, %s980
    %s982 = smul.f32 %s57, %s939
    %s983 = sadd.f32 %s982, 0.0
    %s984 = smul.f32 %s60, %s947
    %s985 = sadd.f32 %s983, %s984
    %s986 = smul.f32 %s68, %s960
    %s987 = sadd.f32 %s985, %s986
    %s988 = smul.f32 %s43, %s961
    %s989 = sadd.f32 %s987, %s988
    %s990 = smul.f32 %s44, %s967
    %s991 = sadd.f32 %s990, 0.0
    %s992 = smul.f32 %s45, %s973
    %s993 = sadd.f32 %s991, %s992
    %s994 = scalar_lea.smem [#allocation7], 43
    %995 = sst [smem:[%s994]] %s993
    %s996 = smul.f32 %s44, %s981
    %s997 = sadd.f32 %s996, 0.0
    %s998 = smul.f32 %s45, %s989
    %s999 = sadd.f32 %s997, %s998
    %s1000 = scalar_lea.smem [#allocation7], 44
    %1001 = sst [smem:[%s1000]] %s999
    %s1002 = sld [smem:[#allocation2 + $0x2d]]
    %s1003 = sld [smem:[#allocation2 + $0x2e]]
    %s1004 = smul.f32 %s36, %s981
    %s1005 = sadd.f32 %s1004, 0.0
    %s1006 = smul.f32 %s37, %s989
    %s1007 = sadd.f32 %s1005, %s1006
    %s1008 = smul.f32 %s41, %s1002
    %s1009 = sadd.f32 %s1007, %s1008
    %s1010 = smul.f32 %s38, %s981
    %s1011 = sadd.f32 %s1010, 0.0
    %s1012 = smul.f32 %s39, %s989
    %s1013 = sadd.f32 %s1011, %s1012
    %s1014 = smul.f32 %s43, %s1002
    %s1015 = sadd.f32 %s1013, %s1014
    %s1016 = smul.f32 %s49, %s981
    %s1017 = sadd.f32 %s1016, 0.0
    %s1018 = smul.f32 %s53, %s989
    %s1019 = sadd.f32 %s1017, %s1018
    %s1020 = smul.f32 %s64, %s1002
    %s1021 = sadd.f32 %s1019, %s1020
    %s1022 = smul.f32 %s41, %s1003
    %s1023 = sadd.f32 %s1021, %s1022
    %s1024 = smul.f32 %s57, %s981
    %s1025 = sadd.f32 %s1024, 0.0
    %s1026 = smul.f32 %s60, %s989
    %s1027 = sadd.f32 %s1025, %s1026
    %s1028 = smul.f32 %s68, %s1002
    %s1029 = sadd.f32 %s1027, %s1028
    %s1030 = smul.f32 %s43, %s1003
    %s1031 = sadd.f32 %s1029, %s1030
    %s1032 = smul.f32 %s44, %s1009
    %s1033 = sadd.f32 %s1032, 0.0
    %s1034 = smul.f32 %s45, %s1015
    %s1035 = sadd.f32 %s1033, %s1034
    %s1036 = scalar_lea.smem [#allocation7], 45
    %1037 = sst [smem:[%s1036]] %s1035
    %s1038 = smul.f32 %s44, %s1023
    %s1039 = sadd.f32 %s1038, 0.0
    %s1040 = smul.f32 %s45, %s1031
    %s1041 = sadd.f32 %s1039, %s1040
    %s1042 = scalar_lea.smem [#allocation7], 46
    %1043 = sst [smem:[%s1042]] %s1041
    %s1044 = sld [smem:[#allocation2 + $0x2f]]
    %s1045 = sld [smem:[#allocation2 + $0x30]]
    %s1046 = smul.f32 %s36, %s1023
    %s1047 = sadd.f32 %s1046, 0.0
    %s1048 = smul.f32 %s37, %s1031
    %s1049 = sadd.f32 %s1047, %s1048
    %s1050 = smul.f32 %s41, %s1044
    %s1051 = sadd.f32 %s1049, %s1050
    %s1052 = smul.f32 %s38, %s1023
    %s1053 = sadd.f32 %s1052, 0.0
    %s1054 = smul.f32 %s39, %s1031
    %s1055 = sadd.f32 %s1053, %s1054
    %s1056 = smul.f32 %s43, %s1044
    %s1057 = sadd.f32 %s1055, %s1056
    %s1058 = smul.f32 %s49, %s1023
    %s1059 = sadd.f32 %s1058, 0.0
    %s1060 = smul.f32 %s53, %s1031
    %s1061 = sadd.f32 %s1059, %s1060
    %s1062 = smul.f32 %s64, %s1044
    %s1063 = sadd.f32 %s1061, %s1062
    %s1064 = smul.f32 %s41, %s1045
    %s1065 = sadd.f32 %s1063, %s1064
    %s1066 = smul.f32 %s57, %s1023
    %s1067 = sadd.f32 %s1066, 0.0
    %s1068 = smul.f32 %s60, %s1031
    %s1069 = sadd.f32 %s1067, %s1068
    %s1070 = smul.f32 %s68, %s1044
    %s1071 = sadd.f32 %s1069, %s1070
    %s1072 = smul.f32 %s43, %s1045
    %s1073 = sadd.f32 %s1071, %s1072
    %s1074 = smul.f32 %s44, %s1051
    %s1075 = sadd.f32 %s1074, 0.0
    %s1076 = smul.f32 %s45, %s1057
    %s1077 = sadd.f32 %s1075, %s1076
    %s1078 = scalar_lea.smem [#allocation7], 47
    %1079 = sst [smem:[%s1078]] %s1077
    %s1080 = smul.f32 %s44, %s1065
    %s1081 = sadd.f32 %s1080, 0.0
    %s1082 = smul.f32 %s45, %s1073
    %s1083 = sadd.f32 %s1081, %s1082
    %s1084 = scalar_lea.smem [#allocation7], 48
    %1085 = sst [smem:[%s1084]] %s1083
    %s1086 = sld [smem:[#allocation2 + $0x31]]
    %s1087 = smul.f32 %s36, %s1065
    %s1088 = sadd.f32 %s1087, 0.0
    %s1089 = smul.f32 %s37, %s1073
    %s1090 = sadd.f32 %s1088, %s1089
    %s1091 = smul.f32 %s41, %s1086
    %s1092 = sadd.f32 %s1090, %s1091
    %s1093 = smul.f32 %s38, %s1065
    %s1094 = sadd.f32 %s1093, 0.0
    %s1095 = smul.f32 %s39, %s1073
    %s1096 = sadd.f32 %s1094, %s1095
    %s1097 = smul.f32 %s43, %s1086
    %s1098 = sadd.f32 %s1096, %s1097
    %s1099 = smul.f32 %s44, %s1092
    %s1100 = sadd.f32 %s1099, 0.0
    %s1101 = smul.f32 %s45, %s1098
    %s1102 = sadd.f32 %s1100, %s1101
    %s1103 = scalar_lea.smem [#allocation7], 49
    %1104 = sst [smem:[%s1103]] %s1102
    // Predicated region
    $region18: #{tpu_custom_call.1} parent=1 // pred_check
      _
    $region19: #{tpu_custom_call.1} parent=1 // pred_check_branch
      %1106 = sbr.rel (0) target = $region21
    $region20: #{tpu_custom_call.1} parent=1 // pred_region
      %s1108 = ssub.s32 16, 16
      %1109 = vsyncadd [#allocation4], %s1108
      %1112 = dma.smem_to_hbm [#allocation7], 16, %s2, [#allocation4]
    $region21: #{tpu_custom_call.1} parent=1 // pred_fallthru
      _
    // Predicated region
    $region22: #{tpu_custom_call.1} parent=1 // pred_check
      _
    $region23: #{tpu_custom_call.1} parent=1 // pred_check_branch
      %1114 = sbr.rel (0) target = $region25
    $region24: #{tpu_custom_call.1} parent=1 // pred_region
      %1115 = dma.done [#allocation4], 16
    $region25: #{tpu_custom_call.1} parent=1 // pred_fallthru
      _
    %1116 = sfence
    %1117 = vsyncpa [#allocation3], 1
    %1118 = vsyncpa [#allocation4], 1
    %1119 = vsyncpa [#allocation5], 1

</llo_original>
